<compile_context>
chip_gen: v7x
topology: tpu7x:2x2x1
jax: 0.10.0
libtpu: 0.0.40
codegen_flags: <defaults>
</compile_context>

<pallas_src>
import functools

import jax
import jax.numpy as jnp
from jax import lax
from jax.experimental import pallas as pl
from jax.experimental.pallas import tpu as pltpu


# ----------------------------------------------------------------------------
# Tile pickers: biggest block that fits a VMEM budget, while keeping the
# sublane dim of every partial block a multiple of 8 (full-extent blocks are
# always legal).
# ----------------------------------------------------------------------------
def _pick_iter_tile(n_it, nb, per_iter_bytes, budget_bytes=4 << 20):
    if n_it * per_iter_bytes <= budget_bytes:
        return n_it
    cand = [t for t in range(1, n_it)
            if n_it % t == 0 and (t * nb) % 8 == 0 and t * per_iter_bytes <= budget_bytes]
    return max(cand) if cand else n_it


def _pick_batch_tile(nb, row_bytes, budget_bytes=4 << 20):
    if nb * row_bytes <= budget_bytes:
        return nb
    cand = [d for d in range(8, nb, 8)
            if nb % d == 0 and d * row_bytes <= budget_bytes]
    return max(cand) if cand else nb


# ----------------------------------------------------------------------------
# Pallas kernel 1: batched DPP diversity score.
#   One grid step scores it_bt iterations x the full batch:
#     new_embs = (embs + h_d * mask) * 0.1                 (VPU; h_d/mask resident)
#     K        = new_embs @ new_embs^T                     (batched Gram, MXU)
#     det(K[b, :l_b, :l_b]) via identity padding + pivot-free Gaussian elimination
#     fully unrolled over nl with static slices (no masked reductions).
# ----------------------------------------------------------------------------
def _score_kernel(e_ref, h_ref, m_ref, score_ref):
    it_bt, nb, nl, _ = e_ref.shape
    B = it_bt * nb

    m = m_ref[...]                                             # (nb, nl) f32 in {0,1}
    # additive combine; h_d/mask broadcast over the fused iteration tile; /10 -> *0.1
    e = (e_ref[...] + (h_ref[...] * m[:, :, None])[None]) * jnp.float32(0.1)
    e = e.reshape(B, nl, -1)                                   # leading-dim merge only

    # Batched Gram matrix on the MXU: K[b] = e[b] @ e[b]^T
    K = jnp.einsum("bnd,bmd->bnm", e, e, preferred_element_type=jnp.float32)  # (B, nl, nl)

    ri = lax.broadcasted_iota(jnp.int32, (1, nl, nl), 1)
    ci = lax.broadcasted_iota(jnp.int32, (1, nl, nl), 2)
    eye = (ri == ci).astype(jnp.float32)

    # Identity-pad rows/cols outside the valid l x l block so det(A) == det(K[:l,:l]).
    # Built as a float blend from the mask outer product (no reductions, no bool masks).
    v2 = m[:, :, None] * m[:, None, :]                          # (nb, nl, nl)
    v2B = jnp.broadcast_to(v2[None], (it_bt, nb, nl, nl)).reshape(B, nl, nl)
    A = K * v2B + eye * (1.0 - v2B)

    det = jnp.ones((B, 1, 1), jnp.float32)
    eps = jnp.float32(1e-30)
    for k in range(nl):                                         # static unroll, static slices
        piv = A[:, k:k + 1, k:k + 1]                            # (B, 1, 1)
        # Clamp the divisor so a singular Gram block yields det ~ 0 instead of NaN
        # (det still accumulates the true, possibly ~0 pivot).
        safe = jnp.where(piv > eps, piv, eps)
        prow = A[:, k:k + 1, :]                                 # (B, 1, nl)
        col = A[:, :, k:k + 1]                                  # (B, nl, 1)
        A = jnp.where(ri > k, A - (col / safe) * prow, A)
        det = det * piv
    score_ref[...] = det[:, :, 0]                               # (B, 1)


def dpp_scores(embs_all, h_d, mask):
    """Scores for all iterations in a single launch: (n_it, nb, nl, D) -> (n_it, nb)."""
    n_it, nb, nl, D = embs_all.shape
    per_iter_bytes = nb * nl * D * 4
    it_bt = _pick_iter_tile(n_it, nb, per_iter_bytes)
    maskf = mask.astype(jnp.float32)                            # (nb, nl)

    out = pl.pallas_call(
        _score_kernel,
        out_shape=jax.ShapeDtypeStruct((n_it * nb, 1), jnp.float32),
        grid=(n_it // it_bt,),
        in_specs=[
            pl.BlockSpec((it_bt, nb, nl, D), lambda t: (t, 0, 0, 0)),
            pl.BlockSpec((nb, nl, D), lambda t: (0, 0, 0)),     # resident across the grid
            pl.BlockSpec((nb, nl), lambda t: (0, 0)),           # resident across the grid
        ],
        out_specs=pl.BlockSpec((it_bt * nb, 1), lambda t: (t, 0)),
        compiler_params=pltpu.CompilerParams(
            dimension_semantics=("parallel",)),                 # iterations are independent
    )(embs_all.astype(jnp.float32), h_d.astype(jnp.float32), maskf)
    return out.reshape(n_it, nb)


# ----------------------------------------------------------------------------
# Pallas kernel 2: diverse_proba (scatter-free redistribution + masked renorm),
# batched over rows, output aliased onto the probas buffer, lane-dense on V.
# ----------------------------------------------------------------------------
def _diverse_kernel(x_ref, bc_ref, m_ref, out_ref, *, redist_weight):
    x = x_ref[...]                                              # (bt, nl, V)
    bc = bc_ref[...]                                            # (bt, nl) int32
    m = m_ref[...]                                              # (bt, nl) int32
    bt, nl, V = x.shape

    vidx = lax.broadcasted_iota(jnp.int32, (bt, nl, V), 2)
    # assign_mask = (1 - w) everywhere, w at the best-choice vocab index (scatter on dim -1)
    assign = jnp.where(vidx == bc[:, :, None], redist_weight, 1.0 - redist_weight)
    x = x * assign.astype(x.dtype)

    nm = jnp.sum(x, axis=-1, keepdims=True)                     # (bt, nl, 1)
    nm = jnp.where(m[:, :, None] == 0, jnp.asarray(1e-10, x.dtype), nm)
    # exact reciprocal keeps valid rows normalized; multiply instead of divide
    out_ref[...] = x * pl.reciprocal(nm)


def diverse_proba(x, best_choice, mask, redist_weight):
    nb, nl, V = x.shape
    bc2d = best_choice.reshape(nb, nl).astype(jnp.int32)
    m2d = mask.reshape(nb, nl).astype(jnp.int32)
    row_bytes = nl * V * x.dtype.itemsize * 2                   # input block + aliased output
    bt = _pick_batch_tile(nb, row_bytes)
    kern = functools.partial(_diverse_kernel, redist_weight=float(redist_weight))

    return pl.pallas_call(
        kern,
        out_shape=jax.ShapeDtypeStruct((nb, nl, V), x.dtype),
        grid=(nb // bt,),
        in_specs=[
            pl.BlockSpec((bt, nl, V), lambda b: (b, 0, 0)),
            pl.BlockSpec((bt, nl), lambda b: (b, 0)),
            pl.BlockSpec((bt, nl), lambda b: (b, 0)),
        ],
        out_specs=pl.BlockSpec((bt, nl, V), lambda b: (b, 0, 0)),
        input_output_aliases={0: 0},                            # reuse the probas buffer
        compiler_params=pltpu.CompilerParams(dimension_semantics=("parallel",)),
    )(x, bc2d, m2d)


# ----------------------------------------------------------------------------
# JAX glue (sampling, gathers, selection loop) — mirrors DPPSearch.dpp_search / forward
# ----------------------------------------------------------------------------
def one_hot_by_mask(mask):
    # TODO(synk): one_hot_by_mask is an external helper in the original repo; assumed to
    # mark the last valid position of each sequence (forced to the greedy MAP choice).
    nl = mask.shape[1]
    lens = jnp.sum(mask, axis=1)
    idx = jnp.arange(nl)[None, :]
    return (idx == (lens[:, None] - 1)).astype(jnp.int32)


def embedding_layer(table, word_indices, mask):
    # TODO(synk): the real embedding_layer is injected in the original repo; a deterministic
    # masked table lookup stands in for it here.
    return table[word_indices] * mask[..., None].astype(table.dtype)


def dpp_search(key, probas, h_d, mask, batch_vocab, emb_table, *, top_k, n_iterations,
               early_stop_cond):
    nb, nl, _ = probas.shape
    MAP = jnp.argmax(probas, axis=-1)[..., None]                      # (nb, nl, 1)
    topk_probas, topk_indices = lax.top_k(probas, top_k)              # (nb, nl, K)
    topk_probas = jnp.where(mask[..., None] < 1, 1.0, topk_probas)    # uniform at padded pos
    logits = jnp.log(topk_probas)
    one_hot = one_hot_by_mask(mask)

    # Sample every iteration up front so the score kernel is launched exactly once.
    choices = jax.random.categorical(key, logits, axis=-1,
                                     shape=(n_iterations, nb, nl))    # (n_it, nb, nl)
    ti = jnp.broadcast_to(topk_indices[None], (n_iterations, nb, nl, top_k))
    samples_all = jnp.take_along_axis(ti, choices[..., None], axis=-1)  # (n_it, nb, nl, 1)
    samples_all = jnp.where(one_hot[None, :, :, None] == 1, MAP[None], samples_all)
    word_indices = batch_vocab[samples_all[..., 0]]                   # (n_it, nb, nl)
    embs_all = embedding_layer(emb_table, word_indices, mask[None])   # (n_it, nb, nl, D)

    scores_all = dpp_scores(embs_all, h_d, mask)                      # one Pallas launch

    # Keep-the-best selection with early-stop emulation.
    # TODO(synk): EarlyStopConditionByCount's dynamic `break` has no data-dependent-exit
    # equivalent under jit; updates are frozen after `early_stop_cond` consecutive
    # no-improvement iterations, which yields the same (best_choice, max_score).
    max_score = scores_all[0]
    best_choice = samples_all[0]
    count = jnp.zeros((), jnp.int32)
    stopped = jnp.zeros((), jnp.bool_)
    for it in range(1, n_iterations):
        score, samples = scores_all[it], samples_all[it]
        improved = max_score < score
        any_imp = jnp.any(improved)
        count = jnp.where(any_imp, 0, count + 1)
        stopped = jnp.logical_or(stopped, count >= early_stop_cond)
        upd = improved & jnp.logical_not(stopped)
        max_score = jnp.where(upd, score, max_score)
        best_choice = jnp.where(upd[:, None, None], samples, best_choice)
    return best_choice, max_score


def dpp_search_forward(key, inputs, params, opt):
    probas = inputs["probas"]
    h_d = inputs["h_d"]
    mask = inputs["mask"].astype(jnp.int32)
    batch_vocab = inputs["batch_vocab"]
    best_choice, max_score = dpp_search(
        key, probas, h_d, mask, batch_vocab, params["emb_table"],
        top_k=opt["top_K"], n_iterations=opt["n_iterations"],
        early_stop_cond=opt["early_stop_cond"])
    new_probas = diverse_proba(probas, best_choice, mask, opt["redist_weight"])
    return new_probas, max_score


# ----------------------------------------------------------------------------
if __name__ == "__main__":
    nb, nl, V, D = 2, 8, 128, 32
    emb_vocab = 256
    opt = {
        "input_method": {"choice": "additive"},   # TODO(synk): 'mlp' branch needs external MLP
        "top_K": 4,
        "n_iterations": 4,
        "early_stop_cond": 2,
        "redist_weight": 0.9,
    }

    key = jax.random.PRNGKey(0)
    k_p, k_h, k_e, k_run = jax.random.split(key, 4)

    probas = jax.nn.softmax(jax.random.normal(k_p, (nb, nl, V), jnp.float32), axis=-1)
    h_d = jax.random.normal(k_h, (nb, nl, D), jnp.float32)
    lens = jnp.array([nl, 5], jnp.int32)
    mask = (jnp.arange(nl)[None, :] < lens[:, None]).astype(jnp.int32)
    batch_vocab = ((jnp.arange(V) * 7 + 3) % emb_vocab).astype(jnp.int32)
    emb_table = 0.1 * jax.random.normal(k_e, (emb_vocab, D), jnp.float32)

    inputs = {"probas": probas, "h_d": h_d, "mask": mask, "batch_vocab": batch_vocab}
    params = {"emb_table": emb_table}

    fwd = jax.jit(lambda k, i, p: dpp_search_forward(k, i, p, opt))
    new_probas, max_score = fwd(k_run, inputs, params)
    jax.block_until_ready((new_probas, max_score))

    assert new_probas.shape == (nb, nl, V)
    assert max_score.shape == (nb,)
    assert bool(jnp.all(jnp.isfinite(max_score)))
    # Valid (unmasked) rows must remain normalized distributions.
    row_sums = jnp.sum(new_probas, axis=-1)
    row_sums = jnp.where(mask == 1, row_sums, 1.0)
    assert bool(jnp.all(jnp.abs(row_sums - 1.0) < 1e-3))
    print("KERNEL_OK")
</pallas_src>

<mosaic_0001>
module attributes {stable_mosaic.version = 11 : i64} {
  func.func @_score_kernel(%arg0: i32, %arg1: memref<4x2x8x32xf32, #tpu.memory_space<vmem>>, %arg2: memref<2x8x32xf32, #tpu.memory_space<vmem>>, %arg3: memref<2x8xf32, #tpu.memory_space<vmem>>, %arg4: memref<8x1xf32, #tpu.memory_space<vmem>>) attributes {dimension_semantics = [#tpu.dimension_semantics<parallel>], iteration_bounds = array<i64: 1>, scalar_prefetch = 0 : i64, scratch_operands = 0 : i64, tpu.core_type = #tpu.core_type<tc>, window_params = [{transform_indices = @transform_0, window_bounds = array<i64: 4, 2, 8, 32>}, {pipeline_mode = #tpu.pipeline_mode<synchronous>, transform_indices = @transform_1, window_bounds = array<i64: 2, 8, 32>}, {pipeline_mode = #tpu.pipeline_mode<synchronous>, transform_indices = @transform_2, window_bounds = array<i64: 2, 8>}, {transform_indices = @transform_3, window_bounds = array<i64: 8, 1>}]} {
    %c0 = arith.constant 0 : index
    %c0_0 = arith.constant 0 : index
    %0 = vector.load %arg3[%c0, %c0_0] : memref<2x8xf32, #tpu.memory_space<vmem>>, vector<2x8xf32>
    %c0_1 = arith.constant 0 : index
    %c0_2 = arith.constant 0 : index
    %c0_3 = arith.constant 0 : index
    %c0_4 = arith.constant 0 : index
    %1 = vector.load %arg1[%c0_1, %c0_2, %c0_3, %c0_4] : memref<4x2x8x32xf32, #tpu.memory_space<vmem>>, vector<4x2x8x32xf32>
    %c0_5 = arith.constant 0 : index
    %c0_6 = arith.constant 0 : index
    %c0_7 = arith.constant 0 : index
    %2 = vector.load %arg2[%c0_5, %c0_6, %c0_7] : memref<2x8x32xf32, #tpu.memory_space<vmem>>, vector<2x8x32xf32>
    %3 = vector.shape_cast %0 : vector<2x8xf32> to vector<2x8x1xf32>
    %4 = vector.broadcast %3 : vector<2x8x1xf32> to vector<2x8x32xf32>
    %5 = arith.mulf %2, %4 : vector<2x8x32xf32>
    %6 = vector.shape_cast %5 : vector<2x8x32xf32> to vector<1x2x8x32xf32>
    %7 = vector.broadcast %6 : vector<1x2x8x32xf32> to vector<4x2x8x32xf32>
    %8 = arith.addf %1, %7 : vector<4x2x8x32xf32>
    %cst = arith.constant 1.000000e-01 : f32
    %9 = vector.broadcast %cst : f32 to vector<4x2x8x32xf32>
    %10 = arith.mulf %8, %9 : vector<4x2x8x32xf32>
    %11 = vector.shape_cast %10 : vector<4x2x8x32xf32> to vector<8x8x32xf32>
    "tpu.trace_start"() <{level = 10 : i32, message = "bnd,bmd->bnm"}> : () -> ()
    %cst_8 = arith.constant dense<0.000000e+00> : vector<8x8x8xf32>
    %12 = tpu.matmul %11, %11, %cst_8 {dimension_numbers = #tpu.dot_dimension_numbers<[2], [2], [1], [1], [0, 0, 0, 1, 1, 1], [0], [0]>} : vector<8x8x32xf32>, vector<8x8x32xf32>, vector<8x8x8xf32> -> vector<8x8x8xf32>
    "tpu.trace_stop"() : () -> ()
    %13 = tpu.iota {dimensions = array<i32: 1>} : vector<1x8x8xi32>
    %14 = tpu.iota {dimensions = array<i32: 2>} : vector<1x8x8xi32>
    %15 = arith.cmpi eq, %13, %14 : vector<1x8x8xi32>
    %16 = arith.extui %15 : vector<1x8x8xi1> to vector<1x8x8xi32>
    %17 = arith.sitofp %16 : vector<1x8x8xi32> to vector<1x8x8xf32>
    %18 = vector.shape_cast %0 : vector<2x8xf32> to vector<2x8x1xf32>
    %19 = vector.shape_cast %0 : vector<2x8xf32> to vector<2x1x8xf32>
    %20 = vector.broadcast %18 : vector<2x8x1xf32> to vector<2x8x8xf32>
    %21 = vector.broadcast %19 : vector<2x1x8xf32> to vector<2x8x8xf32>
    %22 = arith.mulf %20, %21 : vector<2x8x8xf32>
    %23 = vector.shape_cast %22 : vector<2x8x8xf32> to vector<1x2x8x8xf32>
    %24 = vector.shape_cast %23 : vector<1x2x8x8xf32> to vector<1x2x8x8xf32>
    %25 = vector.broadcast %24 : vector<1x2x8x8xf32> to vector<4x2x8x8xf32>
    %26 = vector.shape_cast %25 : vector<4x2x8x8xf32> to vector<8x8x8xf32>
    %27 = arith.mulf %12, %26 : vector<8x8x8xf32>
    %cst_9 = arith.constant 1.000000e+00 : f32
    %28 = vector.broadcast %cst_9 : f32 to vector<8x8x8xf32>
    %29 = arith.subf %28, %26 : vector<8x8x8xf32>
    %30 = vector.broadcast %17 : vector<1x8x8xf32> to vector<8x8x8xf32>
    %31 = arith.mulf %30, %29 : vector<8x8x8xf32>
    %32 = arith.addf %27, %31 : vector<8x8x8xf32>
    %cst_10 = arith.constant 1.000000e+00 : f32
    %33 = vector.broadcast %cst_10 : f32 to vector<8x1x1xf32>
    %34 = vector.extract_strided_slice %32 {offsets = [0, 0, 0], sizes = [8, 1, 1], strides = [1, 1, 1]} : vector<8x8x8xf32> to vector<8x1x1xf32>
    %cst_11 = arith.constant 1.000000e-30 : f32
    %35 = vector.broadcast %cst_11 : f32 to vector<8x1x1xf32>
    %36 = arith.cmpf ogt, %34, %35 : vector<8x1x1xf32>
    %cst_12 = arith.constant 1.000000e-30 : f32
    %37 = vector.broadcast %cst_12 : f32 to vector<8x1x1xf32>
    %38 = arith.select %36, %34, %37 : vector<8x1x1xi1>, vector<8x1x1xf32>
    %39 = vector.extract_strided_slice %32 {offsets = [0, 0, 0], sizes = [8, 1, 8], strides = [1, 1, 1]} : vector<8x8x8xf32> to vector<8x1x8xf32>
    %40 = vector.extract_strided_slice %32 {offsets = [0, 0, 0], sizes = [8, 8, 1], strides = [1, 1, 1]} : vector<8x8x8xf32> to vector<8x8x1xf32>
    %c0_i32 = arith.constant 0 : i32
    %41 = vector.broadcast %c0_i32 : i32 to vector<1x8x8xi32>
    %42 = arith.cmpi sgt, %13, %41 : vector<1x8x8xi32>
    %43 = vector.broadcast %38 : vector<8x1x1xf32> to vector<8x8x1xf32>
    %44 = arith.divf %40, %43 : vector<8x8x1xf32>
    %45 = vector.broadcast %44 : vector<8x8x1xf32> to vector<8x8x8xf32>
    %46 = vector.broadcast %39 : vector<8x1x8xf32> to vector<8x8x8xf32>
    %47 = arith.mulf %45, %46 : vector<8x8x8xf32>
    %48 = arith.subf %32, %47 : vector<8x8x8xf32>
    %49 = vector.shape_cast %42 : vector<1x8x8xi1> to vector<1x8x8xi1>
    %50 = vector.broadcast %49 : vector<1x8x8xi1> to vector<8x8x8xi1>
    %51 = arith.select %50, %48, %32 : vector<8x8x8xi1>, vector<8x8x8xf32>
    %52 = arith.mulf %33, %34 : vector<8x1x1xf32>
    %53 = vector.extract_strided_slice %51 {offsets = [0, 1, 1], sizes = [8, 1, 1], strides = [1, 1, 1]} : vector<8x8x8xf32> to vector<8x1x1xf32>
    %cst_13 = arith.constant 1.000000e-30 : f32
    %54 = vector.broadcast %cst_13 : f32 to vector<8x1x1xf32>
    %55 = arith.cmpf ogt, %53, %54 : vector<8x1x1xf32>
    %cst_14 = arith.constant 1.000000e-30 : f32
    %56 = vector.broadcast %cst_14 : f32 to vector<8x1x1xf32>
    %57 = arith.select %55, %53, %56 : vector<8x1x1xi1>, vector<8x1x1xf32>
    %58 = vector.extract_strided_slice %51 {offsets = [0, 1, 0], sizes = [8, 1, 8], strides = [1, 1, 1]} : vector<8x8x8xf32> to vector<8x1x8xf32>
    %59 = vector.extract_strided_slice %51 {offsets = [0, 0, 1], sizes = [8, 8, 1], strides = [1, 1, 1]} : vector<8x8x8xf32> to vector<8x8x1xf32>
    %c1_i32 = arith.constant 1 : i32
    %60 = vector.broadcast %c1_i32 : i32 to vector<1x8x8xi32>
    %61 = arith.cmpi sgt, %13, %60 : vector<1x8x8xi32>
    %62 = vector.broadcast %57 : vector<8x1x1xf32> to vector<8x8x1xf32>
    %63 = arith.divf %59, %62 : vector<8x8x1xf32>
    %64 = vector.broadcast %63 : vector<8x8x1xf32> to vector<8x8x8xf32>
    %65 = vector.broadcast %58 : vector<8x1x8xf32> to vector<8x8x8xf32>
    %66 = arith.mulf %64, %65 : vector<8x8x8xf32>
    %67 = arith.subf %51, %66 : vector<8x8x8xf32>
    %68 = vector.shape_cast %61 : vector<1x8x8xi1> to vector<1x8x8xi1>
    %69 = vector.broadcast %68 : vector<1x8x8xi1> to vector<8x8x8xi1>
    %70 = arith.select %69, %67, %51 : vector<8x8x8xi1>, vector<8x8x8xf32>
    %71 = arith.mulf %52, %53 : vector<8x1x1xf32>
    %72 = vector.extract_strided_slice %70 {offsets = [0, 2, 2], sizes = [8, 1, 1], strides = [1, 1, 1]} : vector<8x8x8xf32> to vector<8x1x1xf32>
    %cst_15 = arith.constant 1.000000e-30 : f32
    %73 = vector.broadcast %cst_15 : f32 to vector<8x1x1xf32>
    %74 = arith.cmpf ogt, %72, %73 : vector<8x1x1xf32>
    %cst_16 = arith.constant 1.000000e-30 : f32
    %75 = vector.broadcast %cst_16 : f32 to vector<8x1x1xf32>
    %76 = arith.select %74, %72, %75 : vector<8x1x1xi1>, vector<8x1x1xf32>
    %77 = vector.extract_strided_slice %70 {offsets = [0, 2, 0], sizes = [8, 1, 8], strides = [1, 1, 1]} : vector<8x8x8xf32> to vector<8x1x8xf32>
    %78 = vector.extract_strided_slice %70 {offsets = [0, 0, 2], sizes = [8, 8, 1], strides = [1, 1, 1]} : vector<8x8x8xf32> to vector<8x8x1xf32>
    %c2_i32 = arith.constant 2 : i32
    %79 = vector.broadcast %c2_i32 : i32 to vector<1x8x8xi32>
    %80 = arith.cmpi sgt, %13, %79 : vector<1x8x8xi32>
    %81 = vector.broadcast %76 : vector<8x1x1xf32> to vector<8x8x1xf32>
    %82 = arith.divf %78, %81 : vector<8x8x1xf32>
    %83 = vector.broadcast %82 : vector<8x8x1xf32> to vector<8x8x8xf32>
    %84 = vector.broadcast %77 : vector<8x1x8xf32> to vector<8x8x8xf32>
    %85 = arith.mulf %83, %84 : vector<8x8x8xf32>
    %86 = arith.subf %70, %85 : vector<8x8x8xf32>
    %87 = vector.shape_cast %80 : vector<1x8x8xi1> to vector<1x8x8xi1>
    %88 = vector.broadcast %87 : vector<1x8x8xi1> to vector<8x8x8xi1>
    %89 = arith.select %88, %86, %70 : vector<8x8x8xi1>, vector<8x8x8xf32>
    %90 = arith.mulf %71, %72 : vector<8x1x1xf32>
    %91 = vector.extract_strided_slice %89 {offsets = [0, 3, 3], sizes = [8, 1, 1], strides = [1, 1, 1]} : vector<8x8x8xf32> to vector<8x1x1xf32>
    %cst_17 = arith.constant 1.000000e-30 : f32
    %92 = vector.broadcast %cst_17 : f32 to vector<8x1x1xf32>
    %93 = arith.cmpf ogt, %91, %92 : vector<8x1x1xf32>
    %cst_18 = arith.constant 1.000000e-30 : f32
    %94 = vector.broadcast %cst_18 : f32 to vector<8x1x1xf32>
    %95 = arith.select %93, %91, %94 : vector<8x1x1xi1>, vector<8x1x1xf32>
    %96 = vector.extract_strided_slice %89 {offsets = [0, 3, 0], sizes = [8, 1, 8], strides = [1, 1, 1]} : vector<8x8x8xf32> to vector<8x1x8xf32>
    %97 = vector.extract_strided_slice %89 {offsets = [0, 0, 3], sizes = [8, 8, 1], strides = [1, 1, 1]} : vector<8x8x8xf32> to vector<8x8x1xf32>
    %c3_i32 = arith.constant 3 : i32
    %98 = vector.broadcast %c3_i32 : i32 to vector<1x8x8xi32>
    %99 = arith.cmpi sgt, %13, %98 : vector<1x8x8xi32>
    %100 = vector.broadcast %95 : vector<8x1x1xf32> to vector<8x8x1xf32>
    %101 = arith.divf %97, %100 : vector<8x8x1xf32>
    %102 = vector.broadcast %101 : vector<8x8x1xf32> to vector<8x8x8xf32>
    %103 = vector.broadcast %96 : vector<8x1x8xf32> to vector<8x8x8xf32>
    %104 = arith.mulf %102, %103 : vector<8x8x8xf32>
    %105 = arith.subf %89, %104 : vector<8x8x8xf32>
    %106 = vector.shape_cast %99 : vector<1x8x8xi1> to vector<1x8x8xi1>
    %107 = vector.broadcast %106 : vector<1x8x8xi1> to vector<8x8x8xi1>
    %108 = arith.select %107, %105, %89 : vector<8x8x8xi1>, vector<8x8x8xf32>
    %109 = arith.mulf %90, %91 : vector<8x1x1xf32>
    %110 = vector.extract_strided_slice %108 {offsets = [0, 4, 4], sizes = [8, 1, 1], strides = [1, 1, 1]} : vector<8x8x8xf32> to vector<8x1x1xf32>
    %cst_19 = arith.constant 1.000000e-30 : f32
    %111 = vector.broadcast %cst_19 : f32 to vector<8x1x1xf32>
    %112 = arith.cmpf ogt, %110, %111 : vector<8x1x1xf32>
    %cst_20 = arith.constant 1.000000e-30 : f32
    %113 = vector.broadcast %cst_20 : f32 to vector<8x1x1xf32>
    %114 = arith.select %112, %110, %113 : vector<8x1x1xi1>, vector<8x1x1xf32>
    %115 = vector.extract_strided_slice %108 {offsets = [0, 4, 0], sizes = [8, 1, 8], strides = [1, 1, 1]} : vector<8x8x8xf32> to vector<8x1x8xf32>
    %116 = vector.extract_strided_slice %108 {offsets = [0, 0, 4], sizes = [8, 8, 1], strides = [1, 1, 1]} : vector<8x8x8xf32> to vector<8x8x1xf32>
    %c4_i32 = arith.constant 4 : i32
    %117 = vector.broadcast %c4_i32 : i32 to vector<1x8x8xi32>
    %118 = arith.cmpi sgt, %13, %117 : vector<1x8x8xi32>
    %119 = vector.broadcast %114 : vector<8x1x1xf32> to vector<8x8x1xf32>
    %120 = arith.divf %116, %119 : vector<8x8x1xf32>
    %121 = vector.broadcast %120 : vector<8x8x1xf32> to vector<8x8x8xf32>
    %122 = vector.broadcast %115 : vector<8x1x8xf32> to vector<8x8x8xf32>
    %123 = arith.mulf %121, %122 : vector<8x8x8xf32>
    %124 = arith.subf %108, %123 : vector<8x8x8xf32>
    %125 = vector.shape_cast %118 : vector<1x8x8xi1> to vector<1x8x8xi1>
    %126 = vector.broadcast %125 : vector<1x8x8xi1> to vector<8x8x8xi1>
    %127 = arith.select %126, %124, %108 : vector<8x8x8xi1>, vector<8x8x8xf32>
    %128 = arith.mulf %109, %110 : vector<8x1x1xf32>
    %129 = vector.extract_strided_slice %127 {offsets = [0, 5, 5], sizes = [8, 1, 1], strides = [1, 1, 1]} : vector<8x8x8xf32> to vector<8x1x1xf32>
    %cst_21 = arith.constant 1.000000e-30 : f32
    %130 = vector.broadcast %cst_21 : f32 to vector<8x1x1xf32>
    %131 = arith.cmpf ogt, %129, %130 : vector<8x1x1xf32>
    %cst_22 = arith.constant 1.000000e-30 : f32
    %132 = vector.broadcast %cst_22 : f32 to vector<8x1x1xf32>
    %133 = arith.select %131, %129, %132 : vector<8x1x1xi1>, vector<8x1x1xf32>
    %134 = vector.extract_strided_slice %127 {offsets = [0, 5, 0], sizes = [8, 1, 8], strides = [1, 1, 1]} : vector<8x8x8xf32> to vector<8x1x8xf32>
    %135 = vector.extract_strided_slice %127 {offsets = [0, 0, 5], sizes = [8, 8, 1], strides = [1, 1, 1]} : vector<8x8x8xf32> to vector<8x8x1xf32>
    %c5_i32 = arith.constant 5 : i32
    %136 = vector.broadcast %c5_i32 : i32 to vector<1x8x8xi32>
    %137 = arith.cmpi sgt, %13, %136 : vector<1x8x8xi32>
    %138 = vector.broadcast %133 : vector<8x1x1xf32> to vector<8x8x1xf32>
    %139 = arith.divf %135, %138 : vector<8x8x1xf32>
    %140 = vector.broadcast %139 : vector<8x8x1xf32> to vector<8x8x8xf32>
    %141 = vector.broadcast %134 : vector<8x1x8xf32> to vector<8x8x8xf32>
    %142 = arith.mulf %140, %141 : vector<8x8x8xf32>
    %143 = arith.subf %127, %142 : vector<8x8x8xf32>
    %144 = vector.shape_cast %137 : vector<1x8x8xi1> to vector<1x8x8xi1>
    %145 = vector.broadcast %144 : vector<1x8x8xi1> to vector<8x8x8xi1>
    %146 = arith.select %145, %143, %127 : vector<8x8x8xi1>, vector<8x8x8xf32>
    %147 = arith.mulf %128, %129 : vector<8x1x1xf32>
    %148 = vector.extract_strided_slice %146 {offsets = [0, 6, 6], sizes = [8, 1, 1], strides = [1, 1, 1]} : vector<8x8x8xf32> to vector<8x1x1xf32>
    %cst_23 = arith.constant 1.000000e-30 : f32
    %149 = vector.broadcast %cst_23 : f32 to vector<8x1x1xf32>
    %150 = arith.cmpf ogt, %148, %149 : vector<8x1x1xf32>
    %cst_24 = arith.constant 1.000000e-30 : f32
    %151 = vector.broadcast %cst_24 : f32 to vector<8x1x1xf32>
    %152 = arith.select %150, %148, %151 : vector<8x1x1xi1>, vector<8x1x1xf32>
    %153 = vector.extract_strided_slice %146 {offsets = [0, 6, 0], sizes = [8, 1, 8], strides = [1, 1, 1]} : vector<8x8x8xf32> to vector<8x1x8xf32>
    %154 = vector.extract_strided_slice %146 {offsets = [0, 0, 6], sizes = [8, 8, 1], strides = [1, 1, 1]} : vector<8x8x8xf32> to vector<8x8x1xf32>
    %c6_i32 = arith.constant 6 : i32
    %155 = vector.broadcast %c6_i32 : i32 to vector<1x8x8xi32>
    %156 = arith.cmpi sgt, %13, %155 : vector<1x8x8xi32>
    %157 = vector.broadcast %152 : vector<8x1x1xf32> to vector<8x8x1xf32>
    %158 = arith.divf %154, %157 : vector<8x8x1xf32>
    %159 = vector.broadcast %158 : vector<8x8x1xf32> to vector<8x8x8xf32>
    %160 = vector.broadcast %153 : vector<8x1x8xf32> to vector<8x8x8xf32>
    %161 = arith.mulf %159, %160 : vector<8x8x8xf32>
    %162 = arith.subf %146, %161 : vector<8x8x8xf32>
    %163 = vector.shape_cast %156 : vector<1x8x8xi1> to vector<1x8x8xi1>
    %164 = vector.broadcast %163 : vector<1x8x8xi1> to vector<8x8x8xi1>
    %165 = arith.select %164, %162, %146 : vector<8x8x8xi1>, vector<8x8x8xf32>
    %166 = arith.mulf %147, %148 : vector<8x1x1xf32>
    %167 = vector.extract_strided_slice %165 {offsets = [0, 7, 7], sizes = [8, 1, 1], strides = [1, 1, 1]} : vector<8x8x8xf32> to vector<8x1x1xf32>
    %168 = arith.mulf %166, %167 : vector<8x1x1xf32>
    %169 = vector.shape_cast %168 : vector<8x1x1xf32> to vector<8x1xf32>
    %c0_25 = arith.constant 0 : index
    %c0_26 = arith.constant 0 : index
    %170 = vector.load %arg4[%c0_25, %c0_26] : memref<8x1xf32, #tpu.memory_space<vmem>>, vector<8x1xf32>
    tpu.vector_store %arg4[%c0_25, %c0_26], %169 {strides = array<i32>} : memref<8x1xf32, #tpu.memory_space<vmem>>, vector<8x1xf32>,
    return
  }
  func.func @transform_0(%arg0: i32) -> (i32, i32, i32, i32) {
    %c0_i32 = arith.constant 0 : i32
    %c0_i32_0 = arith.constant 0 : i32
    %c0_i32_1 = arith.constant 0 : i32
    %c0_i32_2 = arith.constant 0 : i32
    return %arg0, %c0_i32, %c0_i32_0, %c0_i32_1 : i32, i32, i32, i32
  }
  func.func @transform_1(%arg0: i32) -> (i32, i32, i32) {
    %c0_i32 = arith.constant 0 : i32
    %c0_i32_0 = arith.constant 0 : i32
    %c0_i32_1 = arith.constant 0 : i32
    %c0_i32_2 = arith.constant 0 : i32
    return %c0_i32, %c0_i32_0, %c0_i32_1 : i32, i32, i32
  }
  func.func @transform_2(%arg0: i32) -> (i32, i32) {
    %c0_i32 = arith.constant 0 : i32
    %c0_i32_0 = arith.constant 0 : i32
    %c0_i32_1 = arith.constant 0 : i32
    return %c0_i32, %c0_i32_0 : i32, i32
  }
  func.func @transform_3(%arg0: i32) -> (i32, i32) {
    %c0_i32 = arith.constant 0 : i32
    %c0_i32_0 = arith.constant 0 : i32
    return %arg0, %c0_i32 : i32, i32
  }
}

module attributes {stable_mosaic.version = 11 : i64} {
  func.func @_diverse_kernel(%arg0: i32, %arg1: memref<2x8x128xf32, #tpu.memory_space<vmem>>, %arg2: memref<2x8xi32, #tpu.memory_space<vmem>>, %arg3: memref<2x8xi32, #tpu.memory_space<vmem>>, %arg4: memref<2x8x128xf32, #tpu.memory_space<vmem>>) attributes {dimension_semantics = [#tpu.dimension_semantics<parallel>], iteration_bounds = array<i64: 1>, scalar_prefetch = 0 : i64, scratch_operands = 0 : i64, tpu.core_type = #tpu.core_type<tc>, window_params = [{transform_indices = @transform_0, window_bounds = array<i64: 2, 8, 128>}, {transform_indices = @transform_1, window_bounds = array<i64: 2, 8>}, {transform_indices = @transform_2, window_bounds = array<i64: 2, 8>}, {transform_indices = @transform_3, window_bounds = array<i64: 2, 8, 128>}]} {
    %c0 = arith.constant 0 : index
    %c0_0 = arith.constant 0 : index
    %c0_1 = arith.constant 0 : index
    %0 = vector.load %arg1[%c0, %c0_0, %c0_1] : memref<2x8x128xf32, #tpu.memory_space<vmem>>, vector<2x8x128xf32>
    %c0_2 = arith.constant 0 : index
    %c0_3 = arith.constant 0 : index
    %1 = vector.load %arg2[%c0_2, %c0_3] : memref<2x8xi32, #tpu.memory_space<vmem>>, vector<2x8xi32>
    %c0_4 = arith.constant 0 : index
    %c0_5 = arith.constant 0 : index
    %2 = vector.load %arg3[%c0_4, %c0_5] : memref<2x8xi32, #tpu.memory_space<vmem>>, vector<2x8xi32>
    %3 = tpu.iota {dimensions = array<i32: 2>} : vector<2x8x128xi32>
    %4 = vector.shape_cast %1 : vector<2x8xi32> to vector<2x8x1xi32>
    %5 = vector.broadcast %4 : vector<2x8x1xi32> to vector<2x8x128xi32>
    %6 = arith.cmpi eq, %3, %5 : vector<2x8x128xi32>
    %cst = arith.constant 0.899999976 : f32
    %cst_6 = arith.constant 1.000000e-01 : f32
    %7 = vector.broadcast %cst : f32 to vector<2x8x128xf32>
    %8 = vector.broadcast %cst_6 : f32 to vector<2x8x128xf32>
    %9 = arith.select %6, %7, %8 : vector<2x8x128xi1>, vector<2x8x128xf32>
    %10 = arith.mulf %0, %9 : vector<2x8x128xf32>
    %cst_7 = arith.constant dense<0.000000e+00> : vector<2x8xf32>
    %11 = vector.multi_reduction <add>, %10, %cst_7 [2] : vector<2x8x128xf32> to vector<2x8xf32>
    %12 = vector.shape_cast %11 : vector<2x8xf32> to vector<2x8x1xf32>
    %13 = vector.shape_cast %2 : vector<2x8xi32> to vector<2x8x1xi32>
    %c0_i32 = arith.constant 0 : i32
    %14 = vector.broadcast %c0_i32 : i32 to vector<2x8x1xi32>
    %15 = arith.cmpi eq, %13, %14 : vector<2x8x1xi32>
    %cst_8 = arith.constant 1.000000e-10 : f32
    %16 = vector.broadcast %cst_8 : f32 to vector<2x8x1xf32>
    %17 = arith.select %15, %16, %12 : vector<2x8x1xi1>, vector<2x8x1xf32>
    %18 = tpu.reciprocal %17 : vector<2x8x1xf32> -> vector<2x8x1xf32>
    %19 = vector.broadcast %18 : vector<2x8x1xf32> to vector<2x8x128xf32>
    %20 = arith.mulf %10, %19 : vector<2x8x128xf32>
    %c0_9 = arith.constant 0 : index
    %c0_10 = arith.constant 0 : index
    %c0_11 = arith.constant 0 : index
    %21 = vector.load %arg4[%c0_9, %c0_10, %c0_11] : memref<2x8x128xf32, #tpu.memory_space<vmem>>, vector<2x8x128xf32>
    tpu.vector_store %arg4[%c0_9, %c0_10, %c0_11], %20 {strides = array<i32>} : memref<2x8x128xf32, #tpu.memory_space<vmem>>, vector<2x8x128xf32>,
    return
  }
  func.func @transform_0(%arg0: i32) -> (i32, i32, i32) {
    %c0_i32 = arith.constant 0 : i32
    %c0_i32_0 = arith.constant 0 : i32
    %c0_i32_1 = arith.constant 0 : i32
    return %arg0, %c0_i32, %c0_i32_0 : i32, i32, i32
  }
  func.func @transform_1(%arg0: i32) -> (i32, i32) {
    %c0_i32 = arith.constant 0 : i32
    %c0_i32_0 = arith.constant 0 : i32
    return %arg0, %c0_i32 : i32, i32
  }
  func.func @transform_2(%arg0: i32) -> (i32, i32) {
    %c0_i32 = arith.constant 0 : i32
    %c0_i32_0 = arith.constant 0 : i32
    return %arg0, %c0_i32 : i32, i32
  }
  func.func @transform_3(%arg0: i32) -> (i32, i32, i32) {
    %c0_i32 = arith.constant 0 : i32
    %c0_i32_0 = arith.constant 0 : i32
    %c0_i32_1 = arith.constant 0 : i32
    return %arg0, %c0_i32, %c0_i32_0 : i32, i32, i32
  }
}

</mosaic_0001>

<llo_original>
// kernel: _lambda_.3
$region0: #{_lambda_.3}
  #allocation0 [shape = 'u32[]', space=smem, size = 0x4, offset = 0x4, fixed_abs, tag = 'smem constant byte address 0x4 - core index']
  #allocation1 [shape = 'u32[144,128]{1,0:T(1,128)}', space=vmem, size = 0x12000, scoped, tag = 'internal scratch']
  %s0 = inlined_call_operand.vmem [shape: f32[2,8,128], index: 0, kind: input, shape index: {}, may-alias: {0,3}]
  %s1 = inlined_call_operand.vmem [shape: s32[2,8], index: 1, kind: input, shape index: {}]
  %s2 = inlined_call_operand.vmem [shape: s32[2,8], index: 2, kind: input, shape index: {}]
  %s3 = inlined_call_operand.vmem [shape: f32[2,8,128], index: 3, kind: output, shape index: {}, may-alias: {0,3}]
  %s4 = sld [smem:[#allocation0]]
  $region22: #{_lambda_.3} parent=0
    _
  %s6 = ssub.s32 1, %s4
  %s7 = scalar_select 0, %s6, %s4
  // Predicated region
  $region2: #{_lambda_.3} parent=0 // pred_check
    _
  $region3: #{_lambda_.3} parent=0 // pred_check_branch
    %9 = sbr.rel (0) target = $region5
  $region4: #{_lambda_.3} parent=0 // pred_region
    _
  $region5: #{_lambda_.3} parent=0 // pred_fallthru
    _
  // Predicated region
  $region6: #{_lambda_.3} parent=0 // pred_check
    _
  $region7: #{_lambda_.3} parent=0 // pred_check_branch
    %11 = sbr.rel (0) target = $region9
  $region8: #{_lambda_.3} parent=0 // pred_region
    _
  $region9: #{_lambda_.3} parent=0 // pred_fallthru
    _
  // Predicated region
  $region10: #{_lambda_.3} parent=0 // pred_check
    _
  $region11: #{_lambda_.3} parent=0 // pred_check_branch
    %13 = sbr.rel (0) target = $region13
  $region12: #{_lambda_.3} parent=0 // pred_region
    _
  $region13: #{_lambda_.3} parent=0 // pred_fallthru
    _
  %v14 = vld [vmem:[%s0] sm:$0xff]
  %v15 = vld [vmem:[%s0 + $0x8] sm:$0xff]
  %v16 = vld [vmem:[%s1] sm:$0x3]
  %v17 = vld [vmem:[%s2] sm:$0x3]
  %v18 = vlaneseq
  %v19 = vand.u32 %v18, 127
  %v20 = vlaneseq
  %v21 = vshrl.u32 %v20, 7
  %v22 = vsub.s32 0, %v21
  %v23 = vrot.slane %v16, %v22
  %25 = vbcast.lane.b32.xlu0 %v23, 256
  %v26 = vpop.permute.xlu0 %25
  %v27 = vlaneseq
  %v28 = vshrl.u32 %v27, 7
  %v29 = vsub.s32 1, %v28
  %v30 = vrot.slane %v16, %v29
  %32 = vbcast.lane.b32.xlu0 %v30, 256
  %v33 = vpop.permute.xlu0 %32
  %vm34 = vcmp.eq.s32.totalorder %v19, %v26
  %vm35 = vcmp.eq.s32.totalorder %v19, %v33
  %v36 = vsel %vm34, 0.9, 0.1
  %v37 = vsel %vm35, 0.9, 0.1
  %v38 = vmul.f32 %v14, %v36
  %v39 = vmul.f32 %v15, %v37
  %40 = vadd.xlane.f32.xlu0 %v38
  %v41 = vpop.xlane.xlu0 %40
  %42 = vadd.xlane.f32.xlu0 %v39
  %v43 = vpop.xlane.xlu0 %42
  %v44 = vlaneseq
  %v45 = vshrl.u32 %v44, 7
  %v46 = vsub.s32 0, %v45
  %v47 = vrot.slane %v17, %v46
  %49 = vbcast.lane.b32.xlu0 %v47, 256
  %v50 = vpop.permute.xlu0 %49
  %v51 = vlaneseq
  %v52 = vshrl.u32 %v51, 7
  %v53 = vsub.s32 1, %v52
  %v54 = vrot.slane %v17, %v53
  %56 = vbcast.lane.b32.xlu0 %v54, 256
  %v57 = vpop.permute.xlu0 %56
  %vm58 = vcmp.eq.s32.totalorder %v50, 0
  %vm59 = vcmp.eq.s32.totalorder %v57, 0
  %v60 = vsel %vm58, 1e-10, %v41
  %v61 = vsel %vm59, 1e-10, %v43
  %v62 = vrcp.pop %v60
  %v63 = vrcp.pop %v61
  %v64 = vmul.f32 %v38, %v62
  %v65 = vmul.f32 %v39, %v63
  %66 = vst [vmem:[%s3] sm:$0xff] %v64
  %67 = vst [vmem:[%s3 + $0x8] sm:$0xff] %v65
  // Predicated region
  $region14: #{_lambda_.3} parent=0 // pred_check
    _
  $region15: #{_lambda_.3} parent=0 // pred_check_branch
    %69 = sbr.rel (0) target = $region17
  $region16: #{_lambda_.3} parent=0 // pred_region
    _
  $region17: #{_lambda_.3} parent=0 // pred_fallthru
    _
  // Predicated region
  $region18: #{_lambda_.3} parent=0 // pred_check
    _
  $region19: #{_lambda_.3} parent=0 // pred_check_branch
    %71 = sbr.rel (0) target = $region21
  $region20: #{_lambda_.3} parent=0 // pred_region
    _
  $region21: #{_lambda_.3} parent=0 // pred_fallthru
    _

// kernel: _lambda_.2
$region0: #{_lambda_.2}
  #allocation0 [shape = 'u32[]', space=smem, size = 0x4, offset = 0x4, fixed_abs, tag = 'smem constant byte address 0x4 - core index']
  #allocation1 [shape = 'u32[144,128]{1,0:T(1,128)}', space=vmem, size = 0x12000, scoped, tag = 'internal scratch']
  %s0 = inlined_call_operand.vmem [shape: f32[4,2,8,32], index: 0, kind: input, shape index: {}]
  %s1 = inlined_call_operand.vmem [shape: f32[2,8,32], index: 1, kind: input, shape index: {}]
  %s2 = inlined_call_operand.vmem [shape: f32[2,8], index: 2, kind: input, shape index: {}]
  %s3 = inlined_call_operand.vmem [shape: f32[8,1], index: 3, kind: output, shape index: {}]
  %s4 = sld [smem:[#allocation0]]
  $region22: #{_lambda_.2} parent=0
    _
  %s6 = ssub.s32 1, %s4
  %s7 = scalar_select 0, %s6, %s4
  // Predicated region
  $region2: #{_lambda_.2} parent=0 // pred_check
    _
  $region3: #{_lambda_.2} parent=0 // pred_check_branch
    %9 = sbr.rel (0) target = $region5
  $region4: #{_lambda_.2} parent=0 // pred_region
    _
  $region5: #{_lambda_.2} parent=0 // pred_fallthru
    _
  // Predicated region
  $region6: #{_lambda_.2} parent=0 // pred_check
    _
  $region7: #{_lambda_.2} parent=0 // pred_check_branch
    %11 = sbr.rel (0) target = $region9
  $region8: #{_lambda_.2} parent=0 // pred_region
    _
  $region9: #{_lambda_.2} parent=0 // pred_fallthru
    _
  // Predicated region
  $region10: #{_lambda_.2} parent=0 // pred_check
    _
  $region11: #{_lambda_.2} parent=0 // pred_check_branch
    %13 = sbr.rel (0) target = $region13
  $region12: #{_lambda_.2} parent=0 // pred_region
    _
  $region13: #{_lambda_.2} parent=0 // pred_fallthru
    _
  %v14 = vld [vmem:[%s2] sm:$0x3]
  %v15 = vld [vmem:[%s0] sm:$0xff]
  %v16 = vld [vmem:[%s0 + $0x8] sm:$0xff]
  %v17 = vld [vmem:[%s0 + $0x10] sm:$0xff]
  %v18 = vld [vmem:[%s0 + $0x18] sm:$0xff]
  %v19 = vld [vmem:[%s0 + $0x20] sm:$0xff]
  %v20 = vld [vmem:[%s0 + $0x28] sm:$0xff]
  %v21 = vld [vmem:[%s0 + $0x30] sm:$0xff]
  %v22 = vld [vmem:[%s0 + $0x38] sm:$0xff]
  %v23 = vld [vmem:[%s1] sm:$0xff]
  %v24 = vld [vmem:[%s1 + $0x8] sm:$0xff]
  %v25 = vlaneseq
  %v26 = vshrl.u32 %v25, 7
  %v27 = vsub.s32 0, %v26
  %v28 = vrot.slane %v14, %v27
  %30 = vbcast.lane.b32.xlu0 %v28, 256
  %v31 = vpop.permute.xlu0 %30
  %v32 = vlaneseq
  %v33 = vshrl.u32 %v32, 7
  %v34 = vsub.s32 1, %v33
  %v35 = vrot.slane %v14, %v34
  %37 = vbcast.lane.b32.xlu0 %v35, 256
  %v38 = vpop.permute.xlu0 %37
  %v39 = vmul.f32 %v23, %v31
  %v40 = vmul.f32 %v24, %v38
  %v41 = vadd.f32 %v15, %v39
  %v42 = vadd.f32 %v16, %v40
  %v43 = vadd.f32 %v17, %v39
  %v44 = vadd.f32 %v18, %v40
  %v45 = vadd.f32 %v19, %v39
  %v46 = vadd.f32 %v20, %v40
  %v47 = vadd.f32 %v21, %v39
  %v48 = vadd.f32 %v22, %v40
  %v49 = vmul.f32 %v41, 0.1
  %v50 = vmul.f32 %v42, 0.1
  %v51 = vmul.f32 %v43, 0.1
  %v52 = vmul.f32 %v44, 0.1
  %v53 = vmul.f32 %v45, 0.1
  %v54 = vmul.f32 %v46, 0.1
  %v55 = vmul.f32 %v47, 0.1
  %v56 = vmul.f32 %v48, 0.1
  %vm57 = vcmask 261120
  %v59 = vsel %vm57, %v49, 0
  %61 = vmatprep.subr.mxu0 0.0
  %62 = vmatpush1.xpose.msra.mxu0 %v59
  %63 = vmatprep.subr.mxu0 0.0
  %64 = vmatpush1.xpose.msra.mxu0 0.0
  %65 = vmatprep.subr.mxu0 0.0
  %66 = vmatpush1.xpose.msra.mxu0 0.0
  %67 = vmatprep.subr.mxu0 0.0
  %68 = vmatpush1.xpose.msra.mxu0 0.0
  %69 = vmatprep.subr.mxu0 0.0
  %70 = vmatpush1.xpose.msra.mxu0 0.0
  %71 = vmatprep.subr.mxu0 0.0
  %72 = vmatpush1.xpose.msra.mxu0 0.0
  %73 = vmatprep.subr.mxu0 0.0
  %74 = vmatpush1.xpose.msra.mxu0 0.0
  %75 = vmatprep.subr.mxu0 0.0
  %76 = vmatpush1.xpose.msra.mxu0 0.0
  %77 = vmatprep.subr.mxu0 0.0
  %78 = vmatpush1.xpose.msra.mxu0 0.0
  %79 = vmatprep.subr.mxu0 0.0
  %80 = vmatpush1.xpose.msra.mxu0 0.0
  %81 = vmatprep.subr.mxu0 0.0
  %82 = vmatpush1.xpose.msra.mxu0 0.0
  %83 = vmatprep.subr.mxu0 0.0
  %84 = vmatpush1.xpose.msra.mxu0 0.0
  %85 = vmatprep.subr.mxu0 0.0
  %86 = vmatpush1.xpose.msra.mxu0 0.0
  %87 = vmatprep.subr.mxu0 0.0
  %88 = vmatpush1.xpose.msra.mxu0 0.0
  %89 = vmatprep.subr.mxu0 0.0
  %90 = vmatpush1.xpose.msra.mxu0 0.0
  %91 = vmatprep.subr.mxu0 0.0
  %92 = vmatpush1.xpose.msra.mxu0 0.0
  %93 = vmatprep.subr.mxu0 0.0
  %94 = vmatpush1.xpose.msra.mxu0 0.0
  %95 = vmatprep.subr.mxu0 0.0
  %96 = vmatpush1.xpose.msra.mxu0 0.0
  %97 = vmatprep.subr.mxu0 0.0
  %98 = vmatpush1.xpose.msra.mxu0 0.0
  %99 = vmatprep.subr.mxu0 0.0
  %100 = vmatpush1.xpose.msra.mxu0 0.0
  %101 = vmatprep.subr.mxu0 0.0
  %102 = vmatpush1.xpose.msra.mxu0 0.0
  %103 = vmatprep.subr.mxu0 0.0
  %104 = vmatpush1.xpose.msra.mxu0 0.0
  %105 = vmatprep.subr.mxu0 0.0
  %106 = vmatpush1.xpose.msra.mxu0 0.0
  %107 = vmatprep.subr.mxu0 0.0
  %108 = vmatpush1.xpose.msra.mxu0 0.0
  %109 = vmatprep.subr.mxu0 0.0
  %110 = vmatpush1.xpose.msra.mxu0 0.0
  %111 = vmatprep.subr.mxu0 0.0
  %112 = vmatpush1.xpose.msra.mxu0 0.0
  %113 = vmatprep.subr.mxu0 0.0
  %114 = vmatpush1.xpose.msra.mxu0 0.0
  %115 = vmatprep.subr.mxu0 0.0
  %116 = vmatpush1.xpose.msra.mxu0 0.0
  %117 = vmatprep.subr.mxu0 0.0
  %118 = vmatpush1.xpose.msra.mxu0 0.0
  %119 = vmatprep.subr.mxu0 0.0
  %120 = vmatpush1.xpose.msra.mxu0 0.0
  %121 = vmatprep.subr.mxu0 0.0
  %122 = vmatpush1.xpose.msra.mxu0 0.0
  %123 = vmatprep.subr.mxu0 0.0
  %124 = vmatpush1.xpose.msra.mxu0 0.0
  %125 = vmatprep.mubr.f32.mxu0 0.0
  %126 = vmatmul.mubr.f32.gmra.mrb[0].mxu0 %v59
  %v127 = vpop.f32.mrb[0].mxu0
  %v128 = vadd.f32 0.0, %v127
  %v129 = vpop.f32.mrb[0].mxu0
  %130 = vdwg.mxu0
  %v132 = vsel %vm57, %v50, 0
  %134 = vmatprep.subr.mxu0 0.0
  %135 = vmatpush1.xpose.msra.mxu0 %v132
  %136 = vmatprep.subr.mxu0 0.0
  %137 = vmatpush1.xpose.msra.mxu0 0.0
  %138 = vmatprep.subr.mxu0 0.0
  %139 = vmatpush1.xpose.msra.mxu0 0.0
  %140 = vmatprep.subr.mxu0 0.0
  %141 = vmatpush1.xpose.msra.mxu0 0.0
  %142 = vmatprep.subr.mxu0 0.0
  %143 = vmatpush1.xpose.msra.mxu0 0.0
  %144 = vmatprep.subr.mxu0 0.0
  %145 = vmatpush1.xpose.msra.mxu0 0.0
  %146 = vmatprep.subr.mxu0 0.0
  %147 = vmatpush1.xpose.msra.mxu0 0.0
  %148 = vmatprep.subr.mxu0 0.0
  %149 = vmatpush1.xpose.msra.mxu0 0.0
  %150 = vmatprep.subr.mxu0 0.0
  %151 = vmatpush1.xpose.msra.mxu0 0.0
  %152 = vmatprep.subr.mxu0 0.0
  %153 = vmatpush1.xpose.msra.mxu0 0.0
  %154 = vmatprep.subr.mxu0 0.0
  %155 = vmatpush1.xpose.msra.mxu0 0.0
  %156 = vmatprep.subr.mxu0 0.0
  %157 = vmatpush1.xpose.msra.mxu0 0.0
  %158 = vmatprep.subr.mxu0 0.0
  %159 = vmatpush1.xpose.msra.mxu0 0.0
  %160 = vmatprep.subr.mxu0 0.0
  %161 = vmatpush1.xpose.msra.mxu0 0.0
  %162 = vmatprep.subr.mxu0 0.0
  %163 = vmatpush1.xpose.msra.mxu0 0.0
  %164 = vmatprep.subr.mxu0 0.0
  %165 = vmatpush1.xpose.msra.mxu0 0.0
  %166 = vmatprep.subr.mxu0 0.0
  %167 = vmatpush1.xpose.msra.mxu0 0.0
  %168 = vmatprep.subr.mxu0 0.0
  %169 = vmatpush1.xpose.msra.mxu0 0.0
  %170 = vmatprep.subr.mxu0 0.0
  %171 = vmatpush1.xpose.msra.mxu0 0.0
  %172 = vmatprep.subr.mxu0 0.0
  %173 = vmatpush1.xpose.msra.mxu0 0.0
  %174 = vmatprep.subr.mxu0 0.0
  %175 = vmatpush1.xpose.msra.mxu0 0.0
  %176 = vmatprep.subr.mxu0 0.0
  %177 = vmatpush1.xpose.msra.mxu0 0.0
  %178 = vmatprep.subr.mxu0 0.0
  %179 = vmatpush1.xpose.msra.mxu0 0.0
  %180 = vmatprep.subr.mxu0 0.0
  %181 = vmatpush1.xpose.msra.mxu0 0.0
  %182 = vmatprep.subr.mxu0 0.0
  %183 = vmatpush1.xpose.msra.mxu0 0.0
  %184 = vmatprep.subr.mxu0 0.0
  %185 = vmatpush1.xpose.msra.mxu0 0.0
  %186 = vmatprep.subr.mxu0 0.0
  %187 = vmatpush1.xpose.msra.mxu0 0.0
  %188 = vmatprep.subr.mxu0 0.0
  %189 = vmatpush1.xpose.msra.mxu0 0.0
  %190 = vmatprep.subr.mxu0 0.0
  %191 = vmatpush1.xpose.msra.mxu0 0.0
  %192 = vmatprep.subr.mxu0 0.0
  %193 = vmatpush1.xpose.msra.mxu0 0.0
  %194 = vmatprep.subr.mxu0 0.0
  %195 = vmatpush1.xpose.msra.mxu0 0.0
  %196 = vmatprep.subr.mxu0 0.0
  %197 = vmatpush1.xpose.msra.mxu0 0.0
  %198 = vmatprep.mubr.f32.mxu0 0.0
  %199 = vmatmul.mubr.f32.gmra.mrb[0].mxu0 %v132
  %v200 = vpop.f32.mrb[0].mxu0
  %v201 = vadd.f32 0.0, %v200
  %v202 = vpop.f32.mrb[0].mxu0
  %203 = vdwg.mxu0
  %v205 = vsel %vm57, %v51, 0
  %207 = vmatprep.subr.mxu0 0.0
  %208 = vmatpush1.xpose.msra.mxu0 %v205
  %209 = vmatprep.subr.mxu0 0.0
  %210 = vmatpush1.xpose.msra.mxu0 0.0
  %211 = vmatprep.subr.mxu0 0.0
  %212 = vmatpush1.xpose.msra.mxu0 0.0
  %213 = vmatprep.subr.mxu0 0.0
  %214 = vmatpush1.xpose.msra.mxu0 0.0
  %215 = vmatprep.subr.mxu0 0.0
  %216 = vmatpush1.xpose.msra.mxu0 0.0
  %217 = vmatprep.subr.mxu0 0.0
  %218 = vmatpush1.xpose.msra.mxu0 0.0
  %219 = vmatprep.subr.mxu0 0.0
  %220 = vmatpush1.xpose.msra.mxu0 0.0
  %221 = vmatprep.subr.mxu0 0.0
  %222 = vmatpush1.xpose.msra.mxu0 0.0
  %223 = vmatprep.subr.mxu0 0.0
  %224 = vmatpush1.xpose.msra.mxu0 0.0
  %225 = vmatprep.subr.mxu0 0.0
  %226 = vmatpush1.xpose.msra.mxu0 0.0
  %227 = vmatprep.subr.mxu0 0.0
  %228 = vmatpush1.xpose.msra.mxu0 0.0
  %229 = vmatprep.subr.mxu0 0.0
  %230 = vmatpush1.xpose.msra.mxu0 0.0
  %231 = vmatprep.subr.mxu0 0.0
  %232 = vmatpush1.xpose.msra.mxu0 0.0
  %233 = vmatprep.subr.mxu0 0.0
  %234 = vmatpush1.xpose.msra.mxu0 0.0
  %235 = vmatprep.subr.mxu0 0.0
  %236 = vmatpush1.xpose.msra.mxu0 0.0
  %237 = vmatprep.subr.mxu0 0.0
  %238 = vmatpush1.xpose.msra.mxu0 0.0
  %239 = vmatprep.subr.mxu0 0.0
  %240 = vmatpush1.xpose.msra.mxu0 0.0
  %241 = vmatprep.subr.mxu0 0.0
  %242 = vmatpush1.xpose.msra.mxu0 0.0
  %243 = vmatprep.subr.mxu0 0.0
  %244 = vmatpush1.xpose.msra.mxu0 0.0
  %245 = vmatprep.subr.mxu0 0.0
  %246 = vmatpush1.xpose.msra.mxu0 0.0
  %247 = vmatprep.subr.mxu0 0.0
  %248 = vmatpush1.xpose.msra.mxu0 0.0
  %249 = vmatprep.subr.mxu0 0.0
  %250 = vmatpush1.xpose.msra.mxu0 0.0
  %251 = vmatprep.subr.mxu0 0.0
  %252 = vmatpush1.xpose.msra.mxu0 0.0
  %253 = vmatprep.subr.mxu0 0.0
  %254 = vmatpush1.xpose.msra.mxu0 0.0
  %255 = vmatprep.subr.mxu0 0.0
  %256 = vmatpush1.xpose.msra.mxu0 0.0
  %257 = vmatprep.subr.mxu0 0.0
  %258 = vmatpush1.xpose.msra.mxu0 0.0
  %259 = vmatprep.subr.mxu0 0.0
  %260 = vmatpush1.xpose.msra.mxu0 0.0
  %261 = vmatprep.subr.mxu0 0.0
  %262 = vmatpush1.xpose.msra.mxu0 0.0
  %263 = vmatprep.subr.mxu0 0.0
  %264 = vmatpush1.xpose.msra.mxu0 0.0
  %265 = vmatprep.subr.mxu0 0.0
  %266 = vmatpush1.xpose.msra.mxu0 0.0
  %267 = vmatprep.subr.mxu0 0.0
  %268 = vmatpush1.xpose.msra.mxu0 0.0
  %269 = vmatprep.subr.mxu0 0.0
  %270 = vmatpush1.xpose.msra.mxu0 0.0
  %271 = vmatprep.mubr.f32.mxu0 0.0
  %272 = vmatmul.mubr.f32.gmra.mrb[0].mxu0 %v205
  %v273 = vpop.f32.mrb[0].mxu0
  %v274 = vadd.f32 0.0, %v273
  %v275 = vpop.f32.mrb[0].mxu0
  %276 = vdwg.mxu0
  %v278 = vsel %vm57, %v52, 0
  %280 = vmatprep.subr.mxu0 0.0
  %281 = vmatpush1.xpose.msra.mxu0 %v278
  %282 = vmatprep.subr.mxu0 0.0
  %283 = vmatpush1.xpose.msra.mxu0 0.0
  %284 = vmatprep.subr.mxu0 0.0
  %285 = vmatpush1.xpose.msra.mxu0 0.0
  %286 = vmatprep.subr.mxu0 0.0
  %287 = vmatpush1.xpose.msra.mxu0 0.0
  %288 = vmatprep.subr.mxu0 0.0
  %289 = vmatpush1.xpose.msra.mxu0 0.0
  %290 = vmatprep.subr.mxu0 0.0
  %291 = vmatpush1.xpose.msra.mxu0 0.0
  %292 = vmatprep.subr.mxu0 0.0
  %293 = vmatpush1.xpose.msra.mxu0 0.0
  %294 = vmatprep.subr.mxu0 0.0
  %295 = vmatpush1.xpose.msra.mxu0 0.0
  %296 = vmatprep.subr.mxu0 0.0
  %297 = vmatpush1.xpose.msra.mxu0 0.0
  %298 = vmatprep.subr.mxu0 0.0
  %299 = vmatpush1.xpose.msra.mxu0 0.0
  %300 = vmatprep.subr.mxu0 0.0
  %301 = vmatpush1.xpose.msra.mxu0 0.0
  %302 = vmatprep.subr.mxu0 0.0
  %303 = vmatpush1.xpose.msra.mxu0 0.0
  %304 = vmatprep.subr.mxu0 0.0
  %305 = vmatpush1.xpose.msra.mxu0 0.0
  %306 = vmatprep.subr.mxu0 0.0
  %307 = vmatpush1.xpose.msra.mxu0 0.0
  %308 = vmatprep.subr.mxu0 0.0
  %309 = vmatpush1.xpose.msra.mxu0 0.0
  %310 = vmatprep.subr.mxu0 0.0
  %311 = vmatpush1.xpose.msra.mxu0 0.0
  %312 = vmatprep.subr.mxu0 0.0
  %313 = vmatpush1.xpose.msra.mxu0 0.0
  %314 = vmatprep.subr.mxu0 0.0
  %315 = vmatpush1.xpose.msra.mxu0 0.0
  %316 = vmatprep.subr.mxu0 0.0
  %317 = vmatpush1.xpose.msra.mxu0 0.0
  %318 = vmatprep.subr.mxu0 0.0
  %319 = vmatpush1.xpose.msra.mxu0 0.0
  %320 = vmatprep.subr.mxu0 0.0
  %321 = vmatpush1.xpose.msra.mxu0 0.0
  %322 = vmatprep.subr.mxu0 0.0
  %323 = vmatpush1.xpose.msra.mxu0 0.0
  %324 = vmatprep.subr.mxu0 0.0
  %325 = vmatpush1.xpose.msra.mxu0 0.0
  %326 = vmatprep.subr.mxu0 0.0
  %327 = vmatpush1.xpose.msra.mxu0 0.0
  %328 = vmatprep.subr.mxu0 0.0
  %329 = vmatpush1.xpose.msra.mxu0 0.0
  %330 = vmatprep.subr.mxu0 0.0
  %331 = vmatpush1.xpose.msra.mxu0 0.0
  %332 = vmatprep.subr.mxu0 0.0
  %333 = vmatpush1.xpose.msra.mxu0 0.0
  %334 = vmatprep.subr.mxu0 0.0
  %335 = vmatpush1.xpose.msra.mxu0 0.0
  %336 = vmatprep.subr.mxu0 0.0
  %337 = vmatpush1.xpose.msra.mxu0 0.0
  %338 = vmatprep.subr.mxu0 0.0
  %339 = vmatpush1.xpose.msra.mxu0 0.0
  %340 = vmatprep.subr.mxu0 0.0
  %341 = vmatpush1.xpose.msra.mxu0 0.0
  %342 = vmatprep.subr.mxu0 0.0
  %343 = vmatpush1.xpose.msra.mxu0 0.0
  %344 = vmatprep.mubr.f32.mxu0 0.0
  %345 = vmatmul.mubr.f32.gmra.mrb[0].mxu0 %v278
  %v346 = vpop.f32.mrb[0].mxu0
  %v347 = vadd.f32 0.0, %v346
  %v348 = vpop.f32.mrb[0].mxu0
  %349 = vdwg.mxu0
  %v351 = vsel %vm57, %v53, 0
  %353 = vmatprep.subr.mxu0 0.0
  %354 = vmatpush1.xpose.msra.mxu0 %v351
  %355 = vmatprep.subr.mxu0 0.0
  %356 = vmatpush1.xpose.msra.mxu0 0.0
  %357 = vmatprep.subr.mxu0 0.0
  %358 = vmatpush1.xpose.msra.mxu0 0.0
  %359 = vmatprep.subr.mxu0 0.0
  %360 = vmatpush1.xpose.msra.mxu0 0.0
  %361 = vmatprep.subr.mxu0 0.0
  %362 = vmatpush1.xpose.msra.mxu0 0.0
  %363 = vmatprep.subr.mxu0 0.0
  %364 = vmatpush1.xpose.msra.mxu0 0.0
  %365 = vmatprep.subr.mxu0 0.0
  %366 = vmatpush1.xpose.msra.mxu0 0.0
  %367 = vmatprep.subr.mxu0 0.0
  %368 = vmatpush1.xpose.msra.mxu0 0.0
  %369 = vmatprep.subr.mxu0 0.0
  %370 = vmatpush1.xpose.msra.mxu0 0.0
  %371 = vmatprep.subr.mxu0 0.0
  %372 = vmatpush1.xpose.msra.mxu0 0.0
  %373 = vmatprep.subr.mxu0 0.0
  %374 = vmatpush1.xpose.msra.mxu0 0.0
  %375 = vmatprep.subr.mxu0 0.0
  %376 = vmatpush1.xpose.msra.mxu0 0.0
  %377 = vmatprep.subr.mxu0 0.0
  %378 = vmatpush1.xpose.msra.mxu0 0.0
  %379 = vmatprep.subr.mxu0 0.0
  %380 = vmatpush1.xpose.msra.mxu0 0.0
  %381 = vmatprep.subr.mxu0 0.0
  %382 = vmatpush1.xpose.msra.mxu0 0.0
  %383 = vmatprep.subr.mxu0 0.0
  %384 = vmatpush1.xpose.msra.mxu0 0.0
  %385 = vmatprep.subr.mxu0 0.0
  %386 = vmatpush1.xpose.msra.mxu0 0.0
  %387 = vmatprep.subr.mxu0 0.0
  %388 = vmatpush1.xpose.msra.mxu0 0.0
  %389 = vmatprep.subr.mxu0 0.0
  %390 = vmatpush1.xpose.msra.mxu0 0.0
  %391 = vmatprep.subr.mxu0 0.0
  %392 = vmatpush1.xpose.msra.mxu0 0.0
  %393 = vmatprep.subr.mxu0 0.0
  %394 = vmatpush1.xpose.msra.mxu0 0.0
  %395 = vmatprep.subr.mxu0 0.0
  %396 = vmatpush1.xpose.msra.mxu0 0.0
  %397 = vmatprep.subr.mxu0 0.0
  %398 = vmatpush1.xpose.msra.mxu0 0.0
  %399 = vmatprep.subr.mxu0 0.0
  %400 = vmatpush1.xpose.msra.mxu0 0.0
  %401 = vmatprep.subr.mxu0 0.0
  %402 = vmatpush1.xpose.msra.mxu0 0.0
  %403 = vmatprep.subr.mxu0 0.0
  %404 = vmatpush1.xpose.msra.mxu0 0.0
  %405 = vmatprep.subr.mxu0 0.0
  %406 = vmatpush1.xpose.msra.mxu0 0.0
  %407 = vmatprep.subr.mxu0 0.0
  %408 = vmatpush1.xpose.msra.mxu0 0.0
  %409 = vmatprep.subr.mxu0 0.0
  %410 = vmatpush1.xpose.msra.mxu0 0.0
  %411 = vmatprep.subr.mxu0 0.0
  %412 = vmatpush1.xpose.msra.mxu0 0.0
  %413 = vmatprep.subr.mxu0 0.0
  %414 = vmatpush1.xpose.msra.mxu0 0.0
  %415 = vmatprep.subr.mxu0 0.0
  %416 = vmatpush1.xpose.msra.mxu0 0.0
  %417 = vmatprep.mubr.f32.mxu0 0.0
  %418 = vmatmul.mubr.f32.gmra.mrb[0].mxu0 %v351
  %v419 = vpop.f32.mrb[0].mxu0
  %v420 = vadd.f32 0.0, %v419
  %v421 = vpop.f32.mrb[0].mxu0
  %422 = vdwg.mxu0
  %v424 = vsel %vm57, %v54, 0
  %426 = vmatprep.subr.mxu0 0.0
  %427 = vmatpush1.xpose.msra.mxu0 %v424
  %428 = vmatprep.subr.mxu0 0.0
  %429 = vmatpush1.xpose.msra.mxu0 0.0
  %430 = vmatprep.subr.mxu0 0.0
  %431 = vmatpush1.xpose.msra.mxu0 0.0
  %432 = vmatprep.subr.mxu0 0.0
  %433 = vmatpush1.xpose.msra.mxu0 0.0
  %434 = vmatprep.subr.mxu0 0.0
  %435 = vmatpush1.xpose.msra.mxu0 0.0
  %436 = vmatprep.subr.mxu0 0.0
  %437 = vmatpush1.xpose.msra.mxu0 0.0
  %438 = vmatprep.subr.mxu0 0.0
  %439 = vmatpush1.xpose.msra.mxu0 0.0
  %440 = vmatprep.subr.mxu0 0.0
  %441 = vmatpush1.xpose.msra.mxu0 0.0
  %442 = vmatprep.subr.mxu0 0.0
  %443 = vmatpush1.xpose.msra.mxu0 0.0
  %444 = vmatprep.subr.mxu0 0.0
  %445 = vmatpush1.xpose.msra.mxu0 0.0
  %446 = vmatprep.subr.mxu0 0.0
  %447 = vmatpush1.xpose.msra.mxu0 0.0
  %448 = vmatprep.subr.mxu0 0.0
  %449 = vmatpush1.xpose.msra.mxu0 0.0
  %450 = vmatprep.subr.mxu0 0.0
  %451 = vmatpush1.xpose.msra.mxu0 0.0
  %452 = vmatprep.subr.mxu0 0.0
  %453 = vmatpush1.xpose.msra.mxu0 0.0
  %454 = vmatprep.subr.mxu0 0.0
  %455 = vmatpush1.xpose.msra.mxu0 0.0
  %456 = vmatprep.subr.mxu0 0.0
  %457 = vmatpush1.xpose.msra.mxu0 0.0
  %458 = vmatprep.subr.mxu0 0.0
  %459 = vmatpush1.xpose.msra.mxu0 0.0
  %460 = vmatprep.subr.mxu0 0.0
  %461 = vmatpush1.xpose.msra.mxu0 0.0
  %462 = vmatprep.subr.mxu0 0.0
  %463 = vmatpush1.xpose.msra.mxu0 0.0
  %464 = vmatprep.subr.mxu0 0.0
  %465 = vmatpush1.xpose.msra.mxu0 0.0
  %466 = vmatprep.subr.mxu0 0.0
  %467 = vmatpush1.xpose.msra.mxu0 0.0
  %468 = vmatprep.subr.mxu0 0.0
  %469 = vmatpush1.xpose.msra.mxu0 0.0
  %470 = vmatprep.subr.mxu0 0.0
  %471 = vmatpush1.xpose.msra.mxu0 0.0
  %472 = vmatprep.subr.mxu0 0.0
  %473 = vmatpush1.xpose.msra.mxu0 0.0
  %474 = vmatprep.subr.mxu0 0.0
  %475 = vmatpush1.xpose.msra.mxu0 0.0
  %476 = vmatprep.subr.mxu0 0.0
  %477 = vmatpush1.xpose.msra.mxu0 0.0
  %478 = vmatprep.subr.mxu0 0.0
  %479 = vmatpush1.xpose.msra.mxu0 0.0
  %480 = vmatprep.subr.mxu0 0.0
  %481 = vmatpush1.xpose.msra.mxu0 0.0
  %482 = vmatprep.subr.mxu0 0.0
  %483 = vmatpush1.xpose.msra.mxu0 0.0
  %484 = vmatprep.subr.mxu0 0.0
  %485 = vmatpush1.xpose.msra.mxu0 0.0
  %486 = vmatprep.subr.mxu0 0.0
  %487 = vmatpush1.xpose.msra.mxu0 0.0
  %488 = vmatprep.subr.mxu0 0.0
  %489 = vmatpush1.xpose.msra.mxu0 0.0
  %490 = vmatprep.mubr.f32.mxu0 0.0
  %491 = vmatmul.mubr.f32.gmra.mrb[0].mxu0 %v424
  %v492 = vpop.f32.mrb[0].mxu0
  %v493 = vadd.f32 0.0, %v492
  %v494 = vpop.f32.mrb[0].mxu0
  %495 = vdwg.mxu0
  %v497 = vsel %vm57, %v55, 0
  %499 = vmatprep.subr.mxu0 0.0
  %500 = vmatpush1.xpose.msra.mxu0 %v497
  %501 = vmatprep.subr.mxu0 0.0
  %502 = vmatpush1.xpose.msra.mxu0 0.0
  %503 = vmatprep.subr.mxu0 0.0
  %504 = vmatpush1.xpose.msra.mxu0 0.0
  %505 = vmatprep.subr.mxu0 0.0
  %506 = vmatpush1.xpose.msra.mxu0 0.0
  %507 = vmatprep.subr.mxu0 0.0
  %508 = vmatpush1.xpose.msra.mxu0 0.0
  %509 = vmatprep.subr.mxu0 0.0
  %510 = vmatpush1.xpose.msra.mxu0 0.0
  %511 = vmatprep.subr.mxu0 0.0
  %512 = vmatpush1.xpose.msra.mxu0 0.0
  %513 = vmatprep.subr.mxu0 0.0
  %514 = vmatpush1.xpose.msra.mxu0 0.0
  %515 = vmatprep.subr.mxu0 0.0
  %516 = vmatpush1.xpose.msra.mxu0 0.0
  %517 = vmatprep.subr.mxu0 0.0
  %518 = vmatpush1.xpose.msra.mxu0 0.0
  %519 = vmatprep.subr.mxu0 0.0
  %520 = vmatpush1.xpose.msra.mxu0 0.0
  %521 = vmatprep.subr.mxu0 0.0
  %522 = vmatpush1.xpose.msra.mxu0 0.0
  %523 = vmatprep.subr.mxu0 0.0
  %524 = vmatpush1.xpose.msra.mxu0 0.0
  %525 = vmatprep.subr.mxu0 0.0
  %526 = vmatpush1.xpose.msra.mxu0 0.0
  %527 = vmatprep.subr.mxu0 0.0
  %528 = vmatpush1.xpose.msra.mxu0 0.0
  %529 = vmatprep.subr.mxu0 0.0
  %530 = vmatpush1.xpose.msra.mxu0 0.0
  %531 = vmatprep.subr.mxu0 0.0
  %532 = vmatpush1.xpose.msra.mxu0 0.0
  %533 = vmatprep.subr.mxu0 0.0
  %534 = vmatpush1.xpose.msra.mxu0 0.0
  %535 = vmatprep.subr.mxu0 0.0
  %536 = vmatpush1.xpose.msra.mxu0 0.0
  %537 = vmatprep.subr.mxu0 0.0
  %538 = vmatpush1.xpose.msra.mxu0 0.0
  %539 = vmatprep.subr.mxu0 0.0
  %540 = vmatpush1.xpose.msra.mxu0 0.0
  %541 = vmatprep.subr.mxu0 0.0
  %542 = vmatpush1.xpose.msra.mxu0 0.0
  %543 = vmatprep.subr.mxu0 0.0
  %544 = vmatpush1.xpose.msra.mxu0 0.0
  %545 = vmatprep.subr.mxu0 0.0
  %546 = vmatpush1.xpose.msra.mxu0 0.0
  %547 = vmatprep.subr.mxu0 0.0
  %548 = vmatpush1.xpose.msra.mxu0 0.0
  %549 = vmatprep.subr.mxu0 0.0
  %550 = vmatpush1.xpose.msra.mxu0 0.0
  %551 = vmatprep.subr.mxu0 0.0
  %552 = vmatpush1.xpose.msra.mxu0 0.0
  %553 = vmatprep.subr.mxu0 0.0
  %554 = vmatpush1.xpose.msra.mxu0 0.0
  %555 = vmatprep.subr.mxu0 0.0
  %556 = vmatpush1.xpose.msra.mxu0 0.0
  %557 = vmatprep.subr.mxu0 0.0
  %558 = vmatpush1.xpose.msra.mxu0 0.0
  %559 = vmatprep.subr.mxu0 0.0
  %560 = vmatpush1.xpose.msra.mxu0 0.0
  %561 = vmatprep.subr.mxu0 0.0
  %562 = vmatpush1.xpose.msra.mxu0 0.0
  %563 = vmatprep.mubr.f32.mxu0 0.0
  %564 = vmatmul.mubr.f32.gmra.mrb[0].mxu0 %v497
  %v565 = vpop.f32.mrb[0].mxu0
  %v566 = vadd.f32 0.0, %v565
  %v567 = vpop.f32.mrb[0].mxu0
  %568 = vdwg.mxu0
  %v570 = vsel %vm57, %v56, 0
  %572 = vmatprep.subr.mxu0 0.0
  %573 = vmatpush1.xpose.msra.mxu0 %v570
  %574 = vmatprep.subr.mxu0 0.0
  %575 = vmatpush1.xpose.msra.mxu0 0.0
  %576 = vmatprep.subr.mxu0 0.0
  %577 = vmatpush1.xpose.msra.mxu0 0.0
  %578 = vmatprep.subr.mxu0 0.0
  %579 = vmatpush1.xpose.msra.mxu0 0.0
  %580 = vmatprep.subr.mxu0 0.0
  %581 = vmatpush1.xpose.msra.mxu0 0.0
  %582 = vmatprep.subr.mxu0 0.0
  %583 = vmatpush1.xpose.msra.mxu0 0.0
  %584 = vmatprep.subr.mxu0 0.0
  %585 = vmatpush1.xpose.msra.mxu0 0.0
  %586 = vmatprep.subr.mxu0 0.0
  %587 = vmatpush1.xpose.msra.mxu0 0.0
  %588 = vmatprep.subr.mxu0 0.0
  %589 = vmatpush1.xpose.msra.mxu0 0.0
  %590 = vmatprep.subr.mxu0 0.0
  %591 = vmatpush1.xpose.msra.mxu0 0.0
  %592 = vmatprep.subr.mxu0 0.0
  %593 = vmatpush1.xpose.msra.mxu0 0.0
  %594 = vmatprep.subr.mxu0 0.0
  %595 = vmatpush1.xpose.msra.mxu0 0.0
  %596 = vmatprep.subr.mxu0 0.0
  %597 = vmatpush1.xpose.msra.mxu0 0.0
  %598 = vmatprep.subr.mxu0 0.0
  %599 = vmatpush1.xpose.msra.mxu0 0.0
  %600 = vmatprep.subr.mxu0 0.0
  %601 = vmatpush1.xpose.msra.mxu0 0.0
  %602 = vmatprep.subr.mxu0 0.0
  %603 = vmatpush1.xpose.msra.mxu0 0.0
  %604 = vmatprep.subr.mxu0 0.0
  %605 = vmatpush1.xpose.msra.mxu0 0.0
  %606 = vmatprep.subr.mxu0 0.0
  %607 = vmatpush1.xpose.msra.mxu0 0.0
  %608 = vmatprep.subr.mxu0 0.0
  %609 = vmatpush1.xpose.msra.mxu0 0.0
  %610 = vmatprep.subr.mxu0 0.0
  %611 = vmatpush1.xpose.msra.mxu0 0.0
  %612 = vmatprep.subr.mxu0 0.0
  %613 = vmatpush1.xpose.msra.mxu0 0.0
  %614 = vmatprep.subr.mxu0 0.0
  %615 = vmatpush1.xpose.msra.mxu0 0.0
  %616 = vmatprep.subr.mxu0 0.0
  %617 = vmatpush1.xpose.msra.mxu0 0.0
  %618 = vmatprep.subr.mxu0 0.0
  %619 = vmatpush1.xpose.msra.mxu0 0.0
  %620 = vmatprep.subr.mxu0 0.0
  %621 = vmatpush1.xpose.msra.mxu0 0.0
  %622 = vmatprep.subr.mxu0 0.0
  %623 = vmatpush1.xpose.msra.mxu0 0.0
  %624 = vmatprep.subr.mxu0 0.0
  %625 = vmatpush1.xpose.msra.mxu0 0.0
  %626 = vmatprep.subr.mxu0 0.0
  %627 = vmatpush1.xpose.msra.mxu0 0.0
  %628 = vmatprep.subr.mxu0 0.0
  %629 = vmatpush1.xpose.msra.mxu0 0.0
  %630 = vmatprep.subr.mxu0 0.0
  %631 = vmatpush1.xpose.msra.mxu0 0.0
  %632 = vmatprep.subr.mxu0 0.0
  %633 = vmatpush1.xpose.msra.mxu0 0.0
  %634 = vmatprep.subr.mxu0 0.0
  %635 = vmatpush1.xpose.msra.mxu0 0.0
  %636 = vmatprep.mubr.f32.mxu0 0.0
  %637 = vmatmul.mubr.f32.gmra.mrb[0].mxu0 %v570
  %v638 = vpop.f32.mrb[0].mxu0
  %v639 = vadd.f32 0.0, %v638
  %v640 = vpop.f32.mrb[0].mxu0
  %641 = vdwg.mxu0
  %v642 = vlaneseq
  %v643 = vshrl.u32 %v642, 7
  %v644 = vlaneseq
  %v645 = vand.u32 %v644, 127
  %vm646 = vcmp.eq.s32.totalorder %v643, %v645
  %v647 = vsel %vm646, 1, 0
  %v648 = vcvt.s32.f32 %v647
  %v651 = vunpack.c.l.s4 1966171168
  %v652 = vunpack.c.0.s8 %v651
  %v653 = vlaneseq
  %v654 = vshrl.u32 %v653, 7
  %v655 = vsub.s32 %v652, %v654
  %v656 = vrot.slane %v14, %v655
  %v657 = vcombine.high %v656, %v656
  %v659 = vunpack.c.l.s4 1966171168
  %v660 = vunpack.c.0.s8 %v659
  %v661 = vlaneseq
  %v662 = vshrl.u32 %v661, 7
  %v663 = vsub.s32 %v660, %v662
  %v664 = vrot.slane %v656, %v663
  %v666 = vunpack.c.l.s4 1966171168
  %v667 = vunpack.c.0.s8 %v666
  %v668 = vlaneseq
  %v669 = vshrl.u32 %v668, 7
  %v670 = vsub.s32 %v667, %v669
  %v671 = vrot.slane %v657, %v670
  %v672 = vlaneseq
  %v673 = vshrl.u32 %v672, 7
  %v674 = vsub.s32 0, %v673
  %v675 = vrot.slane %v664, %v674
  %v676 = vlaneseq
  %v677 = vshrl.u32 %v676, 7
  %v678 = vsub.s32 0, %v677
  %v679 = vrot.slane %v671, %v678
  %v682 = vmul.f32 %v31, %v675
  %v683 = vmul.f32 %v38, %v679
  %v684 = vmul.f32 %v128, %v682
  %v685 = vmul.f32 %v201, %v683
  %v686 = vmul.f32 %v274, %v682
  %v687 = vmul.f32 %v347, %v683
  %v688 = vmul.f32 %v420, %v682
  %v689 = vmul.f32 %v493, %v683
  %v690 = vmul.f32 %v566, %v682
  %v691 = vmul.f32 %v639, %v683
  %v692 = vsub.f32 1.0, %v682
  %v693 = vsub.f32 1.0, %v683
  %v694 = vmul.f32 %v648, %v692
  %v695 = vmul.f32 %v648, %v693
  %v696 = vadd.f32 %v684, %v694
  %v697 = vadd.f32 %v685, %v695
  %v698 = vadd.f32 %v686, %v694
  %v699 = vadd.f32 %v687, %v695
  %v700 = vadd.f32 %v688, %v694
  %v701 = vadd.f32 %v689, %v695
  %v702 = vadd.f32 %v690, %v694
  %v703 = vadd.f32 %v691, %v695
  %vm704 = vcmp.gt.f32.partialorder %v696, 1e-30
  %vm705 = vcmp.gt.f32.partialorder %v697, 1e-30
  %vm706 = vcmp.gt.f32.partialorder %v698, 1e-30
  %vm707 = vcmp.gt.f32.partialorder %v699, 1e-30
  %vm708 = vcmp.gt.f32.partialorder %v700, 1e-30
  %vm709 = vcmp.gt.f32.partialorder %v701, 1e-30
  %vm710 = vcmp.gt.f32.partialorder %v702, 1e-30
  %vm711 = vcmp.gt.f32.partialorder %v703, 1e-30
  %v712 = vsel %vm704, %v696, 1e-30
  %v713 = vsel %vm705, %v697, 1e-30
  %v714 = vsel %vm706, %v698, 1e-30
  %v715 = vsel %vm707, %v699, 1e-30
  %v716 = vsel %vm708, %v700, 1e-30
  %v717 = vsel %vm709, %v701, 1e-30
  %v718 = vsel %vm710, %v702, 1e-30
  %v719 = vsel %vm711, %v703, 1e-30
  %vm720 = vcmp.gt.s32.totalorder %v643, 0
  %v721 = vlaneseq
  %v722 = vshrl.u32 %v721, 7
  %v723 = vsub.s32 0, %v722
  %v724 = vrot.slane %v712, %v723
  %v725 = vlaneseq
  %v726 = vshrl.u32 %v725, 7
  %v727 = vsub.s32 0, %v726
  %v728 = vrot.slane %v713, %v727
  %v729 = vlaneseq
  %v730 = vshrl.u32 %v729, 7
  %v731 = vsub.s32 0, %v730
  %v732 = vrot.slane %v714, %v731
  %v733 = vlaneseq
  %v734 = vshrl.u32 %v733, 7
  %v735 = vsub.s32 0, %v734
  %v736 = vrot.slane %v715, %v735
  %v737 = vlaneseq
  %v738 = vshrl.u32 %v737, 7
  %v739 = vsub.s32 0, %v738
  %v740 = vrot.slane %v716, %v739
  %v741 = vlaneseq
  %v742 = vshrl.u32 %v741, 7
  %v743 = vsub.s32 0, %v742
  %v744 = vrot.slane %v717, %v743
  %v745 = vlaneseq
  %v746 = vshrl.u32 %v745, 7
  %v747 = vsub.s32 0, %v746
  %v748 = vrot.slane %v718, %v747
  %v749 = vlaneseq
  %v750 = vshrl.u32 %v749, 7
  %v751 = vsub.s32 0, %v750
  %v752 = vrot.slane %v719, %v751
  %v753 = vrcp.pop %v724
  %v754 = vmul.f32 %v696, %v753
  %v755 = vrcp.pop %v728
  %v756 = vmul.f32 %v697, %v755
  %v757 = vrcp.pop %v732
  %v758 = vmul.f32 %v698, %v757
  %v759 = vrcp.pop %v736
  %v760 = vmul.f32 %v699, %v759
  %v761 = vrcp.pop %v740
  %v762 = vmul.f32 %v700, %v761
  %v763 = vrcp.pop %v744
  %v764 = vmul.f32 %v701, %v763
  %v765 = vrcp.pop %v748
  %v766 = vmul.f32 %v702, %v765
  %v767 = vrcp.pop %v752
  %v768 = vmul.f32 %v703, %v767
  %770 = vset.pattern.permute.xlu0 0
  %771 = vperm.xlu0 %770, %v754
  %v772 = vpop.permute.xlu0 %771
  %775 = vset.pattern.permute.xlu0 0
  %776 = vperm.xlu0 %775, %v756
  %v777 = vpop.permute.xlu0 %776
  %780 = vset.pattern.permute.xlu0 0
  %781 = vperm.xlu0 %780, %v758
  %v782 = vpop.permute.xlu0 %781
  %785 = vset.pattern.permute.xlu0 0
  %786 = vperm.xlu0 %785, %v760
  %v787 = vpop.permute.xlu0 %786
  %790 = vset.pattern.permute.xlu0 0
  %791 = vperm.xlu0 %790, %v762
  %v792 = vpop.permute.xlu0 %791
  %795 = vset.pattern.permute.xlu0 0
  %796 = vperm.xlu0 %795, %v764
  %v797 = vpop.permute.xlu0 %796
  %800 = vset.pattern.permute.xlu0 0
  %801 = vperm.xlu0 %800, %v766
  %v802 = vpop.permute.xlu0 %801
  %805 = vset.pattern.permute.xlu0 0
  %806 = vperm.xlu0 %805, %v768
  %v807 = vpop.permute.xlu0 %806
  %v809 = vlaneseq
  %v810 = vshrl.u32 %v809, 7
  %v811 = vsub.s32 0, %v810
  %v812 = vrot.slane %v696, %v811
  %v813 = vlaneseq
  %v814 = vshrl.u32 %v813, 7
  %v815 = vsub.s32 0, %v814
  %v816 = vrot.slane %v697, %v815
  %v817 = vlaneseq
  %v818 = vshrl.u32 %v817, 7
  %v819 = vsub.s32 0, %v818
  %v820 = vrot.slane %v698, %v819
  %v821 = vlaneseq
  %v822 = vshrl.u32 %v821, 7
  %v823 = vsub.s32 0, %v822
  %v824 = vrot.slane %v699, %v823
  %v825 = vlaneseq
  %v826 = vshrl.u32 %v825, 7
  %v827 = vsub.s32 0, %v826
  %v828 = vrot.slane %v700, %v827
  %v829 = vlaneseq
  %v830 = vshrl.u32 %v829, 7
  %v831 = vsub.s32 0, %v830
  %v832 = vrot.slane %v701, %v831
  %v833 = vlaneseq
  %v834 = vshrl.u32 %v833, 7
  %v835 = vsub.s32 0, %v834
  %v836 = vrot.slane %v702, %v835
  %v837 = vlaneseq
  %v838 = vshrl.u32 %v837, 7
  %v839 = vsub.s32 0, %v838
  %v840 = vrot.slane %v703, %v839
  %v841 = vmul.f32 %v772, %v812
  %v842 = vmul.f32 %v777, %v816
  %v843 = vmul.f32 %v782, %v820
  %v844 = vmul.f32 %v787, %v824
  %v845 = vmul.f32 %v792, %v828
  %v846 = vmul.f32 %v797, %v832
  %v847 = vmul.f32 %v802, %v836
  %v848 = vmul.f32 %v807, %v840
  %v849 = vsub.f32 %v696, %v841
  %v850 = vsub.f32 %v697, %v842
  %v851 = vsub.f32 %v698, %v843
  %v852 = vsub.f32 %v699, %v844
  %v853 = vsub.f32 %v700, %v845
  %v854 = vsub.f32 %v701, %v846
  %v855 = vsub.f32 %v702, %v847
  %v856 = vsub.f32 %v703, %v848
  %v857 = vsel %vm720, 1, 0
  %vm858 = vcmp.eq.s32.totalorder %v857, 1
  %v859 = vsel %vm858, %v849, %v696
  %v860 = vsel %vm858, %v850, %v697
  %v861 = vsel %vm858, %v851, %v698
  %v862 = vsel %vm858, %v852, %v699
  %v863 = vsel %vm858, %v853, %v700
  %v864 = vsel %vm858, %v854, %v701
  %v865 = vsel %vm858, %v855, %v702
  %v866 = vsel %vm858, %v856, %v703
  %vm867 = vcmp.gt.f32.partialorder %v859, 1e-30
  %vm868 = vcmp.gt.f32.partialorder %v860, 1e-30
  %vm869 = vcmp.gt.f32.partialorder %v861, 1e-30
  %vm870 = vcmp.gt.f32.partialorder %v862, 1e-30
  %vm871 = vcmp.gt.f32.partialorder %v863, 1e-30
  %vm872 = vcmp.gt.f32.partialorder %v864, 1e-30
  %vm873 = vcmp.gt.f32.partialorder %v865, 1e-30
  %vm874 = vcmp.gt.f32.partialorder %v866, 1e-30
  %v875 = vsel %vm867, %v859, 1e-30
  %v876 = vsel %vm868, %v860, 1e-30
  %v877 = vsel %vm869, %v861, 1e-30
  %v878 = vsel %vm870, %v862, 1e-30
  %v879 = vsel %vm871, %v863, 1e-30
  %v880 = vsel %vm872, %v864, 1e-30
  %v881 = vsel %vm873, %v865, 1e-30
  %v882 = vsel %vm874, %v866, 1e-30
  %vm883 = vcmp.gt.s32.totalorder %v643, 1
  %v884 = vlaneseq
  %v885 = vshrl.u32 %v884, 7
  %v886 = vsub.s32 1, %v885
  %v887 = vrot.slane %v875, %v886
  %v888 = vlaneseq
  %v889 = vshrl.u32 %v888, 7
  %v890 = vsub.s32 1, %v889
  %v891 = vrot.slane %v876, %v890
  %v892 = vlaneseq
  %v893 = vshrl.u32 %v892, 7
  %v894 = vsub.s32 1, %v893
  %v895 = vrot.slane %v877, %v894
  %v896 = vlaneseq
  %v897 = vshrl.u32 %v896, 7
  %v898 = vsub.s32 1, %v897
  %v899 = vrot.slane %v878, %v898
  %v900 = vlaneseq
  %v901 = vshrl.u32 %v900, 7
  %v902 = vsub.s32 1, %v901
  %v903 = vrot.slane %v879, %v902
  %v904 = vlaneseq
  %v905 = vshrl.u32 %v904, 7
  %v906 = vsub.s32 1, %v905
  %v907 = vrot.slane %v880, %v906
  %v908 = vlaneseq
  %v909 = vshrl.u32 %v908, 7
  %v910 = vsub.s32 1, %v909
  %v911 = vrot.slane %v881, %v910
  %v912 = vlaneseq
  %v913 = vshrl.u32 %v912, 7
  %v914 = vsub.s32 1, %v913
  %v915 = vrot.slane %v882, %v914
  %v916 = vrcp.pop %v887
  %v917 = vmul.f32 %v859, %v916
  %v918 = vrcp.pop %v891
  %v919 = vmul.f32 %v860, %v918
  %v920 = vrcp.pop %v895
  %v921 = vmul.f32 %v861, %v920
  %v922 = vrcp.pop %v899
  %v923 = vmul.f32 %v862, %v922
  %v924 = vrcp.pop %v903
  %v925 = vmul.f32 %v863, %v924
  %v926 = vrcp.pop %v907
  %v927 = vmul.f32 %v864, %v926
  %v928 = vrcp.pop %v911
  %v929 = vmul.f32 %v865, %v928
  %v930 = vrcp.pop %v915
  %v931 = vmul.f32 %v866, %v930
  %933 = vset.pattern.permute.xlu0 1
  %934 = vperm.xlu0 %933, %v917
  %v935 = vpop.permute.xlu0 %934
  %938 = vset.pattern.permute.xlu0 1
  %939 = vperm.xlu0 %938, %v919
  %v940 = vpop.permute.xlu0 %939
  %943 = vset.pattern.permute.xlu0 1
  %944 = vperm.xlu0 %943, %v921
  %v945 = vpop.permute.xlu0 %944
  %948 = vset.pattern.permute.xlu0 1
  %949 = vperm.xlu0 %948, %v923
  %v950 = vpop.permute.xlu0 %949
  %953 = vset.pattern.permute.xlu0 1
  %954 = vperm.xlu0 %953, %v925
  %v955 = vpop.permute.xlu0 %954
  %958 = vset.pattern.permute.xlu0 1
  %959 = vperm.xlu0 %958, %v927
  %v960 = vpop.permute.xlu0 %959
  %963 = vset.pattern.permute.xlu0 1
  %964 = vperm.xlu0 %963, %v929
  %v965 = vpop.permute.xlu0 %964
  %968 = vset.pattern.permute.xlu0 1
  %969 = vperm.xlu0 %968, %v931
  %v970 = vpop.permute.xlu0 %969
  %v972 = vlaneseq
  %v973 = vshrl.u32 %v972, 7
  %v974 = vsub.s32 1, %v973
  %v975 = vrot.slane %v859, %v974
  %v976 = vlaneseq
  %v977 = vshrl.u32 %v976, 7
  %v978 = vsub.s32 1, %v977
  %v979 = vrot.slane %v860, %v978
  %v980 = vlaneseq
  %v981 = vshrl.u32 %v980, 7
  %v982 = vsub.s32 1, %v981
  %v983 = vrot.slane %v861, %v982
  %v984 = vlaneseq
  %v985 = vshrl.u32 %v984, 7
  %v986 = vsub.s32 1, %v985
  %v987 = vrot.slane %v862, %v986
  %v988 = vlaneseq
  %v989 = vshrl.u32 %v988, 7
  %v990 = vsub.s32 1, %v989
  %v991 = vrot.slane %v863, %v990
  %v992 = vlaneseq
  %v993 = vshrl.u32 %v992, 7
  %v994 = vsub.s32 1, %v993
  %v995 = vrot.slane %v864, %v994
  %v996 = vlaneseq
  %v997 = vshrl.u32 %v996, 7
  %v998 = vsub.s32 1, %v997
  %v999 = vrot.slane %v865, %v998
  %v1000 = vlaneseq
  %v1001 = vshrl.u32 %v1000, 7
  %v1002 = vsub.s32 1, %v1001
  %v1003 = vrot.slane %v866, %v1002
  %v1004 = vmul.f32 %v935, %v975
  %v1005 = vmul.f32 %v940, %v979
  %v1006 = vmul.f32 %v945, %v983
  %v1007 = vmul.f32 %v950, %v987
  %v1008 = vmul.f32 %v955, %v991
  %v1009 = vmul.f32 %v960, %v995
  %v1010 = vmul.f32 %v965, %v999
  %v1011 = vmul.f32 %v970, %v1003
  %v1012 = vsub.f32 %v859, %v1004
  %v1013 = vsub.f32 %v860, %v1005
  %v1014 = vsub.f32 %v861, %v1006
  %v1015 = vsub.f32 %v862, %v1007
  %v1016 = vsub.f32 %v863, %v1008
  %v1017 = vsub.f32 %v864, %v1009
  %v1018 = vsub.f32 %v865, %v1010
  %v1019 = vsub.f32 %v866, %v1011
  %v1020 = vsel %vm883, 1, 0
  %vm1021 = vcmp.eq.s32.totalorder %v1020, 1
  %v1022 = vsel %vm1021, %v1012, %v859
  %v1023 = vsel %vm1021, %v1013, %v860
  %v1024 = vsel %vm1021, %v1014, %v861
  %v1025 = vsel %vm1021, %v1015, %v862
  %v1026 = vsel %vm1021, %v1016, %v863
  %v1027 = vsel %vm1021, %v1017, %v864
  %v1028 = vsel %vm1021, %v1018, %v865
  %v1029 = vsel %vm1021, %v1019, %v866
  %v1038 = vrot.slane %v859, 1
  %v1039 = vrot.slane %v860, 1
  %v1040 = vrot.slane %v861, 1
  %v1041 = vrot.slane %v862, 1
  %v1042 = vrot.slane %v863, 1
  %v1043 = vrot.slane %v864, 1
  %v1044 = vrot.slane %v865, 1
  %v1045 = vrot.slane %v866, 1
  %1046 = vrot.lane.b32.xlu0 %v1038, 127
  %v1047 = vpop.permute.xlu0 %1046
  %1048 = vrot.lane.b32.xlu0 %v1039, 127
  %v1049 = vpop.permute.xlu0 %1048
  %1050 = vrot.lane.b32.xlu0 %v1040, 127
  %v1051 = vpop.permute.xlu0 %1050
  %1052 = vrot.lane.b32.xlu0 %v1041, 127
  %v1053 = vpop.permute.xlu0 %1052
  %1054 = vrot.lane.b32.xlu0 %v1042, 127
  %v1055 = vpop.permute.xlu0 %1054
  %1056 = vrot.lane.b32.xlu0 %v1043, 127
  %v1057 = vpop.permute.xlu0 %1056
  %1058 = vrot.lane.b32.xlu0 %v1044, 127
  %v1059 = vpop.permute.xlu0 %1058
  %1060 = vrot.lane.b32.xlu0 %v1045, 127
  %v1061 = vpop.permute.xlu0 %1060
  %v1070 = vmul.f32 %v696, %v1047
  %v1071 = vmul.f32 %v697, %v1049
  %v1072 = vmul.f32 %v698, %v1051
  %v1073 = vmul.f32 %v699, %v1053
  %v1074 = vmul.f32 %v700, %v1055
  %v1075 = vmul.f32 %v701, %v1057
  %v1076 = vmul.f32 %v702, %v1059
  %v1077 = vmul.f32 %v703, %v1061
  %vm1078 = vcmp.gt.f32.partialorder %v1022, 1e-30
  %vm1079 = vcmp.gt.f32.partialorder %v1023, 1e-30
  %vm1080 = vcmp.gt.f32.partialorder %v1024, 1e-30
  %vm1081 = vcmp.gt.f32.partialorder %v1025, 1e-30
  %vm1082 = vcmp.gt.f32.partialorder %v1026, 1e-30
  %vm1083 = vcmp.gt.f32.partialorder %v1027, 1e-30
  %vm1084 = vcmp.gt.f32.partialorder %v1028, 1e-30
  %vm1085 = vcmp.gt.f32.partialorder %v1029, 1e-30
  %v1086 = vsel %vm1078, %v1022, 1e-30
  %v1087 = vsel %vm1079, %v1023, 1e-30
  %v1088 = vsel %vm1080, %v1024, 1e-30
  %v1089 = vsel %vm1081, %v1025, 1e-30
  %v1090 = vsel %vm1082, %v1026, 1e-30
  %v1091 = vsel %vm1083, %v1027, 1e-30
  %v1092 = vsel %vm1084, %v1028, 1e-30
  %v1093 = vsel %vm1085, %v1029, 1e-30
  %vm1094 = vcmp.gt.s32.totalorder %v643, 2
  %v1095 = vlaneseq
  %v1096 = vshrl.u32 %v1095, 7
  %v1097 = vsub.s32 2, %v1096
  %v1098 = vrot.slane %v1086, %v1097
  %v1099 = vlaneseq
  %v1100 = vshrl.u32 %v1099, 7
  %v1101 = vsub.s32 2, %v1100
  %v1102 = vrot.slane %v1087, %v1101
  %v1103 = vlaneseq
  %v1104 = vshrl.u32 %v1103, 7
  %v1105 = vsub.s32 2, %v1104
  %v1106 = vrot.slane %v1088, %v1105
  %v1107 = vlaneseq
  %v1108 = vshrl.u32 %v1107, 7
  %v1109 = vsub.s32 2, %v1108
  %v1110 = vrot.slane %v1089, %v1109
  %v1111 = vlaneseq
  %v1112 = vshrl.u32 %v1111, 7
  %v1113 = vsub.s32 2, %v1112
  %v1114 = vrot.slane %v1090, %v1113
  %v1115 = vlaneseq
  %v1116 = vshrl.u32 %v1115, 7
  %v1117 = vsub.s32 2, %v1116
  %v1118 = vrot.slane %v1091, %v1117
  %v1119 = vlaneseq
  %v1120 = vshrl.u32 %v1119, 7
  %v1121 = vsub.s32 2, %v1120
  %v1122 = vrot.slane %v1092, %v1121
  %v1123 = vlaneseq
  %v1124 = vshrl.u32 %v1123, 7
  %v1125 = vsub.s32 2, %v1124
  %v1126 = vrot.slane %v1093, %v1125
  %v1127 = vrcp.pop %v1098
  %v1128 = vmul.f32 %v1022, %v1127
  %v1129 = vrcp.pop %v1102
  %v1130 = vmul.f32 %v1023, %v1129
  %v1131 = vrcp.pop %v1106
  %v1132 = vmul.f32 %v1024, %v1131
  %v1133 = vrcp.pop %v1110
  %v1134 = vmul.f32 %v1025, %v1133
  %v1135 = vrcp.pop %v1114
  %v1136 = vmul.f32 %v1026, %v1135
  %v1137 = vrcp.pop %v1118
  %v1138 = vmul.f32 %v1027, %v1137
  %v1139 = vrcp.pop %v1122
  %v1140 = vmul.f32 %v1028, %v1139
  %v1141 = vrcp.pop %v1126
  %v1142 = vmul.f32 %v1029, %v1141
  %1144 = vset.pattern.permute.xlu0 2
  %1145 = vperm.xlu0 %1144, %v1128
  %v1146 = vpop.permute.xlu0 %1145
  %1149 = vset.pattern.permute.xlu0 2
  %1150 = vperm.xlu0 %1149, %v1130
  %v1151 = vpop.permute.xlu0 %1150
  %1154 = vset.pattern.permute.xlu0 2
  %1155 = vperm.xlu0 %1154, %v1132
  %v1156 = vpop.permute.xlu0 %1155
  %1159 = vset.pattern.permute.xlu0 2
  %1160 = vperm.xlu0 %1159, %v1134
  %v1161 = vpop.permute.xlu0 %1160
  %1164 = vset.pattern.permute.xlu0 2
  %1165 = vperm.xlu0 %1164, %v1136
  %v1166 = vpop.permute.xlu0 %1165
  %1169 = vset.pattern.permute.xlu0 2
  %1170 = vperm.xlu0 %1169, %v1138
  %v1171 = vpop.permute.xlu0 %1170
  %1174 = vset.pattern.permute.xlu0 2
  %1175 = vperm.xlu0 %1174, %v1140
  %v1176 = vpop.permute.xlu0 %1175
  %1179 = vset.pattern.permute.xlu0 2
  %1180 = vperm.xlu0 %1179, %v1142
  %v1181 = vpop.permute.xlu0 %1180
  %v1183 = vlaneseq
  %v1184 = vshrl.u32 %v1183, 7
  %v1185 = vsub.s32 2, %v1184
  %v1186 = vrot.slane %v1022, %v1185
  %v1187 = vlaneseq
  %v1188 = vshrl.u32 %v1187, 7
  %v1189 = vsub.s32 2, %v1188
  %v1190 = vrot.slane %v1023, %v1189
  %v1191 = vlaneseq
  %v1192 = vshrl.u32 %v1191, 7
  %v1193 = vsub.s32 2, %v1192
  %v1194 = vrot.slane %v1024, %v1193
  %v1195 = vlaneseq
  %v1196 = vshrl.u32 %v1195, 7
  %v1197 = vsub.s32 2, %v1196
  %v1198 = vrot.slane %v1025, %v1197
  %v1199 = vlaneseq
  %v1200 = vshrl.u32 %v1199, 7
  %v1201 = vsub.s32 2, %v1200
  %v1202 = vrot.slane %v1026, %v1201
  %v1203 = vlaneseq
  %v1204 = vshrl.u32 %v1203, 7
  %v1205 = vsub.s32 2, %v1204
  %v1206 = vrot.slane %v1027, %v1205
  %v1207 = vlaneseq
  %v1208 = vshrl.u32 %v1207, 7
  %v1209 = vsub.s32 2, %v1208
  %v1210 = vrot.slane %v1028, %v1209
  %v1211 = vlaneseq
  %v1212 = vshrl.u32 %v1211, 7
  %v1213 = vsub.s32 2, %v1212
  %v1214 = vrot.slane %v1029, %v1213
  %v1215 = vmul.f32 %v1146, %v1186
  %v1216 = vmul.f32 %v1151, %v1190
  %v1217 = vmul.f32 %v1156, %v1194
  %v1218 = vmul.f32 %v1161, %v1198
  %v1219 = vmul.f32 %v1166, %v1202
  %v1220 = vmul.f32 %v1171, %v1206
  %v1221 = vmul.f32 %v1176, %v1210
  %v1222 = vmul.f32 %v1181, %v1214
  %v1223 = vsub.f32 %v1022, %v1215
  %v1224 = vsub.f32 %v1023, %v1216
  %v1225 = vsub.f32 %v1024, %v1217
  %v1226 = vsub.f32 %v1025, %v1218
  %v1227 = vsub.f32 %v1026, %v1219
  %v1228 = vsub.f32 %v1027, %v1220
  %v1229 = vsub.f32 %v1028, %v1221
  %v1230 = vsub.f32 %v1029, %v1222
  %v1231 = vsel %vm1094, 1, 0
  %vm1232 = vcmp.eq.s32.totalorder %v1231, 1
  %v1233 = vsel %vm1232, %v1223, %v1022
  %v1234 = vsel %vm1232, %v1224, %v1023
  %v1235 = vsel %vm1232, %v1225, %v1024
  %v1236 = vsel %vm1232, %v1226, %v1025
  %v1237 = vsel %vm1232, %v1227, %v1026
  %v1238 = vsel %vm1232, %v1228, %v1027
  %v1239 = vsel %vm1232, %v1229, %v1028
  %v1240 = vsel %vm1232, %v1230, %v1029
  %v1249 = vrot.slane %v1022, 2
  %v1250 = vrot.slane %v1023, 2
  %v1251 = vrot.slane %v1024, 2
  %v1252 = vrot.slane %v1025, 2
  %v1253 = vrot.slane %v1026, 2
  %v1254 = vrot.slane %v1027, 2
  %v1255 = vrot.slane %v1028, 2
  %v1256 = vrot.slane %v1029, 2
  %1257 = vrot.lane.b32.xlu0 %v1249, 126
  %v1258 = vpop.permute.xlu0 %1257
  %1259 = vrot.lane.b32.xlu0 %v1250, 126
  %v1260 = vpop.permute.xlu0 %1259
  %1261 = vrot.lane.b32.xlu0 %v1251, 126
  %v1262 = vpop.permute.xlu0 %1261
  %1263 = vrot.lane.b32.xlu0 %v1252, 126
  %v1264 = vpop.permute.xlu0 %1263
  %1265 = vrot.lane.b32.xlu0 %v1253, 126
  %v1266 = vpop.permute.xlu0 %1265
  %1267 = vrot.lane.b32.xlu0 %v1254, 126
  %v1268 = vpop.permute.xlu0 %1267
  %1269 = vrot.lane.b32.xlu0 %v1255, 126
  %v1270 = vpop.permute.xlu0 %1269
  %1271 = vrot.lane.b32.xlu0 %v1256, 126
  %v1272 = vpop.permute.xlu0 %1271
  %v1281 = vmul.f32 %v1070, %v1258
  %v1282 = vmul.f32 %v1071, %v1260
  %v1283 = vmul.f32 %v1072, %v1262
  %v1284 = vmul.f32 %v1073, %v1264
  %v1285 = vmul.f32 %v1074, %v1266
  %v1286 = vmul.f32 %v1075, %v1268
  %v1287 = vmul.f32 %v1076, %v1270
  %v1288 = vmul.f32 %v1077, %v1272
  %vm1289 = vcmp.gt.f32.partialorder %v1233, 1e-30
  %vm1290 = vcmp.gt.f32.partialorder %v1234, 1e-30
  %vm1291 = vcmp.gt.f32.partialorder %v1235, 1e-30
  %vm1292 = vcmp.gt.f32.partialorder %v1236, 1e-30
  %vm1293 = vcmp.gt.f32.partialorder %v1237, 1e-30
  %vm1294 = vcmp.gt.f32.partialorder %v1238, 1e-30
  %vm1295 = vcmp.gt.f32.partialorder %v1239, 1e-30
  %vm1296 = vcmp.gt.f32.partialorder %v1240, 1e-30
  %v1297 = vsel %vm1289, %v1233, 1e-30
  %v1298 = vsel %vm1290, %v1234, 1e-30
  %v1299 = vsel %vm1291, %v1235, 1e-30
  %v1300 = vsel %vm1292, %v1236, 1e-30
  %v1301 = vsel %vm1293, %v1237, 1e-30
  %v1302 = vsel %vm1294, %v1238, 1e-30
  %v1303 = vsel %vm1295, %v1239, 1e-30
  %v1304 = vsel %vm1296, %v1240, 1e-30
  %vm1305 = vcmp.gt.s32.totalorder %v643, 3
  %v1306 = vlaneseq
  %v1307 = vshrl.u32 %v1306, 7
  %v1308 = vsub.s32 3, %v1307
  %v1309 = vrot.slane %v1297, %v1308
  %v1310 = vlaneseq
  %v1311 = vshrl.u32 %v1310, 7
  %v1312 = vsub.s32 3, %v1311
  %v1313 = vrot.slane %v1298, %v1312
  %v1314 = vlaneseq
  %v1315 = vshrl.u32 %v1314, 7
  %v1316 = vsub.s32 3, %v1315
  %v1317 = vrot.slane %v1299, %v1316
  %v1318 = vlaneseq
  %v1319 = vshrl.u32 %v1318, 7
  %v1320 = vsub.s32 3, %v1319
  %v1321 = vrot.slane %v1300, %v1320
  %v1322 = vlaneseq
  %v1323 = vshrl.u32 %v1322, 7
  %v1324 = vsub.s32 3, %v1323
  %v1325 = vrot.slane %v1301, %v1324
  %v1326 = vlaneseq
  %v1327 = vshrl.u32 %v1326, 7
  %v1328 = vsub.s32 3, %v1327
  %v1329 = vrot.slane %v1302, %v1328
  %v1330 = vlaneseq
  %v1331 = vshrl.u32 %v1330, 7
  %v1332 = vsub.s32 3, %v1331
  %v1333 = vrot.slane %v1303, %v1332
  %v1334 = vlaneseq
  %v1335 = vshrl.u32 %v1334, 7
  %v1336 = vsub.s32 3, %v1335
  %v1337 = vrot.slane %v1304, %v1336
  %v1338 = vrcp.pop %v1309
  %v1339 = vmul.f32 %v1233, %v1338
  %v1340 = vrcp.pop %v1313
  %v1341 = vmul.f32 %v1234, %v1340
  %v1342 = vrcp.pop %v1317
  %v1343 = vmul.f32 %v1235, %v1342
  %v1344 = vrcp.pop %v1321
  %v1345 = vmul.f32 %v1236, %v1344
  %v1346 = vrcp.pop %v1325
  %v1347 = vmul.f32 %v1237, %v1346
  %v1348 = vrcp.pop %v1329
  %v1349 = vmul.f32 %v1238, %v1348
  %v1350 = vrcp.pop %v1333
  %v1351 = vmul.f32 %v1239, %v1350
  %v1352 = vrcp.pop %v1337
  %v1353 = vmul.f32 %v1240, %v1352
  %1355 = vset.pattern.permute.xlu0 3
  %1356 = vperm.xlu0 %1355, %v1339
  %v1357 = vpop.permute.xlu0 %1356
  %1360 = vset.pattern.permute.xlu0 3
  %1361 = vperm.xlu0 %1360, %v1341
  %v1362 = vpop.permute.xlu0 %1361
  %1365 = vset.pattern.permute.xlu0 3
  %1366 = vperm.xlu0 %1365, %v1343
  %v1367 = vpop.permute.xlu0 %1366
  %1370 = vset.pattern.permute.xlu0 3
  %1371 = vperm.xlu0 %1370, %v1345
  %v1372 = vpop.permute.xlu0 %1371
  %1375 = vset.pattern.permute.xlu0 3
  %1376 = vperm.xlu0 %1375, %v1347
  %v1377 = vpop.permute.xlu0 %1376
  %1380 = vset.pattern.permute.xlu0 3
  %1381 = vperm.xlu0 %1380, %v1349
  %v1382 = vpop.permute.xlu0 %1381
  %1385 = vset.pattern.permute.xlu0 3
  %1386 = vperm.xlu0 %1385, %v1351
  %v1387 = vpop.permute.xlu0 %1386
  %1390 = vset.pattern.permute.xlu0 3
  %1391 = vperm.xlu0 %1390, %v1353
  %v1392 = vpop.permute.xlu0 %1391
  %v1394 = vlaneseq
  %v1395 = vshrl.u32 %v1394, 7
  %v1396 = vsub.s32 3, %v1395
  %v1397 = vrot.slane %v1233, %v1396
  %v1398 = vlaneseq
  %v1399 = vshrl.u32 %v1398, 7
  %v1400 = vsub.s32 3, %v1399
  %v1401 = vrot.slane %v1234, %v1400
  %v1402 = vlaneseq
  %v1403 = vshrl.u32 %v1402, 7
  %v1404 = vsub.s32 3, %v1403
  %v1405 = vrot.slane %v1235, %v1404
  %v1406 = vlaneseq
  %v1407 = vshrl.u32 %v1406, 7
  %v1408 = vsub.s32 3, %v1407
  %v1409 = vrot.slane %v1236, %v1408
  %v1410 = vlaneseq
  %v1411 = vshrl.u32 %v1410, 7
  %v1412 = vsub.s32 3, %v1411
  %v1413 = vrot.slane %v1237, %v1412
  %v1414 = vlaneseq
  %v1415 = vshrl.u32 %v1414, 7
  %v1416 = vsub.s32 3, %v1415
  %v1417 = vrot.slane %v1238, %v1416
  %v1418 = vlaneseq
  %v1419 = vshrl.u32 %v1418, 7
  %v1420 = vsub.s32 3, %v1419
  %v1421 = vrot.slane %v1239, %v1420
  %v1422 = vlaneseq
  %v1423 = vshrl.u32 %v1422, 7
  %v1424 = vsub.s32 3, %v1423
  %v1425 = vrot.slane %v1240, %v1424
  %v1426 = vmul.f32 %v1357, %v1397
  %v1427 = vmul.f32 %v1362, %v1401
  %v1428 = vmul.f32 %v1367, %v1405
  %v1429 = vmul.f32 %v1372, %v1409
  %v1430 = vmul.f32 %v1377, %v1413
  %v1431 = vmul.f32 %v1382, %v1417
  %v1432 = vmul.f32 %v1387, %v1421
  %v1433 = vmul.f32 %v1392, %v1425
  %v1434 = vsub.f32 %v1233, %v1426
  %v1435 = vsub.f32 %v1234, %v1427
  %v1436 = vsub.f32 %v1235, %v1428
  %v1437 = vsub.f32 %v1236, %v1429
  %v1438 = vsub.f32 %v1237, %v1430
  %v1439 = vsub.f32 %v1238, %v1431
  %v1440 = vsub.f32 %v1239, %v1432
  %v1441 = vsub.f32 %v1240, %v1433
  %v1442 = vsel %vm1305, 1, 0
  %vm1443 = vcmp.eq.s32.totalorder %v1442, 1
  %v1444 = vsel %vm1443, %v1434, %v1233
  %v1445 = vsel %vm1443, %v1435, %v1234
  %v1446 = vsel %vm1443, %v1436, %v1235
  %v1447 = vsel %vm1443, %v1437, %v1236
  %v1448 = vsel %vm1443, %v1438, %v1237
  %v1449 = vsel %vm1443, %v1439, %v1238
  %v1450 = vsel %vm1443, %v1440, %v1239
  %v1451 = vsel %vm1443, %v1441, %v1240
  %v1460 = vrot.slane %v1233, 3
  %v1461 = vrot.slane %v1234, 3
  %v1462 = vrot.slane %v1235, 3
  %v1463 = vrot.slane %v1236, 3
  %v1464 = vrot.slane %v1237, 3
  %v1465 = vrot.slane %v1238, 3
  %v1466 = vrot.slane %v1239, 3
  %v1467 = vrot.slane %v1240, 3
  %1468 = vrot.lane.b32.xlu0 %v1460, 125
  %v1469 = vpop.permute.xlu0 %1468
  %1470 = vrot.lane.b32.xlu0 %v1461, 125
  %v1471 = vpop.permute.xlu0 %1470
  %1472 = vrot.lane.b32.xlu0 %v1462, 125
  %v1473 = vpop.permute.xlu0 %1472
  %1474 = vrot.lane.b32.xlu0 %v1463, 125
  %v1475 = vpop.permute.xlu0 %1474
  %1476 = vrot.lane.b32.xlu0 %v1464, 125
  %v1477 = vpop.permute.xlu0 %1476
  %1478 = vrot.lane.b32.xlu0 %v1465, 125
  %v1479 = vpop.permute.xlu0 %1478
  %1480 = vrot.lane.b32.xlu0 %v1466, 125
  %v1481 = vpop.permute.xlu0 %1480
  %1482 = vrot.lane.b32.xlu0 %v1467, 125
  %v1483 = vpop.permute.xlu0 %1482
  %v1492 = vmul.f32 %v1281, %v1469
  %v1493 = vmul.f32 %v1282, %v1471
  %v1494 = vmul.f32 %v1283, %v1473
  %v1495 = vmul.f32 %v1284, %v1475
  %v1496 = vmul.f32 %v1285, %v1477
  %v1497 = vmul.f32 %v1286, %v1479
  %v1498 = vmul.f32 %v1287, %v1481
  %v1499 = vmul.f32 %v1288, %v1483
  %vm1500 = vcmp.gt.f32.partialorder %v1444, 1e-30
  %vm1501 = vcmp.gt.f32.partialorder %v1445, 1e-30
  %vm1502 = vcmp.gt.f32.partialorder %v1446, 1e-30
  %vm1503 = vcmp.gt.f32.partialorder %v1447, 1e-30
  %vm1504 = vcmp.gt.f32.partialorder %v1448, 1e-30
  %vm1505 = vcmp.gt.f32.partialorder %v1449, 1e-30
  %vm1506 = vcmp.gt.f32.partialorder %v1450, 1e-30
  %vm1507 = vcmp.gt.f32.partialorder %v1451, 1e-30
  %v1508 = vsel %vm1500, %v1444, 1e-30
  %v1509 = vsel %vm1501, %v1445, 1e-30
  %v1510 = vsel %vm1502, %v1446, 1e-30
  %v1511 = vsel %vm1503, %v1447, 1e-30
  %v1512 = vsel %vm1504, %v1448, 1e-30
  %v1513 = vsel %vm1505, %v1449, 1e-30
  %v1514 = vsel %vm1506, %v1450, 1e-30
  %v1515 = vsel %vm1507, %v1451, 1e-30
  %vm1516 = vcmp.gt.s32.totalorder %v643, 4
  %v1517 = vlaneseq
  %v1518 = vshrl.u32 %v1517, 7
  %v1519 = vsub.s32 4, %v1518
  %v1520 = vrot.slane %v1508, %v1519
  %v1521 = vlaneseq
  %v1522 = vshrl.u32 %v1521, 7
  %v1523 = vsub.s32 4, %v1522
  %v1524 = vrot.slane %v1509, %v1523
  %v1525 = vlaneseq
  %v1526 = vshrl.u32 %v1525, 7
  %v1527 = vsub.s32 4, %v1526
  %v1528 = vrot.slane %v1510, %v1527
  %v1529 = vlaneseq
  %v1530 = vshrl.u32 %v1529, 7
  %v1531 = vsub.s32 4, %v1530
  %v1532 = vrot.slane %v1511, %v1531
  %v1533 = vlaneseq
  %v1534 = vshrl.u32 %v1533, 7
  %v1535 = vsub.s32 4, %v1534
  %v1536 = vrot.slane %v1512, %v1535
  %v1537 = vlaneseq
  %v1538 = vshrl.u32 %v1537, 7
  %v1539 = vsub.s32 4, %v1538
  %v1540 = vrot.slane %v1513, %v1539
  %v1541 = vlaneseq
  %v1542 = vshrl.u32 %v1541, 7
  %v1543 = vsub.s32 4, %v1542
  %v1544 = vrot.slane %v1514, %v1543
  %v1545 = vlaneseq
  %v1546 = vshrl.u32 %v1545, 7
  %v1547 = vsub.s32 4, %v1546
  %v1548 = vrot.slane %v1515, %v1547
  %v1549 = vrcp.pop %v1520
  %v1550 = vmul.f32 %v1444, %v1549
  %v1551 = vrcp.pop %v1524
  %v1552 = vmul.f32 %v1445, %v1551
  %v1553 = vrcp.pop %v1528
  %v1554 = vmul.f32 %v1446, %v1553
  %v1555 = vrcp.pop %v1532
  %v1556 = vmul.f32 %v1447, %v1555
  %v1557 = vrcp.pop %v1536
  %v1558 = vmul.f32 %v1448, %v1557
  %v1559 = vrcp.pop %v1540
  %v1560 = vmul.f32 %v1449, %v1559
  %v1561 = vrcp.pop %v1544
  %v1562 = vmul.f32 %v1450, %v1561
  %v1563 = vrcp.pop %v1548
  %v1564 = vmul.f32 %v1451, %v1563
  %1566 = vset.pattern.permute.xlu0 4
  %1567 = vperm.xlu0 %1566, %v1550
  %v1568 = vpop.permute.xlu0 %1567
  %1571 = vset.pattern.permute.xlu0 4
  %1572 = vperm.xlu0 %1571, %v1552
  %v1573 = vpop.permute.xlu0 %1572
  %1576 = vset.pattern.permute.xlu0 4
  %1577 = vperm.xlu0 %1576, %v1554
  %v1578 = vpop.permute.xlu0 %1577
  %1581 = vset.pattern.permute.xlu0 4
  %1582 = vperm.xlu0 %1581, %v1556
  %v1583 = vpop.permute.xlu0 %1582
  %1586 = vset.pattern.permute.xlu0 4
  %1587 = vperm.xlu0 %1586, %v1558
  %v1588 = vpop.permute.xlu0 %1587
  %1591 = vset.pattern.permute.xlu0 4
  %1592 = vperm.xlu0 %1591, %v1560
  %v1593 = vpop.permute.xlu0 %1592
  %1596 = vset.pattern.permute.xlu0 4
  %1597 = vperm.xlu0 %1596, %v1562
  %v1598 = vpop.permute.xlu0 %1597
  %1601 = vset.pattern.permute.xlu0 4
  %1602 = vperm.xlu0 %1601, %v1564
  %v1603 = vpop.permute.xlu0 %1602
  %v1605 = vlaneseq
  %v1606 = vshrl.u32 %v1605, 7
  %v1607 = vsub.s32 4, %v1606
  %v1608 = vrot.slane %v1444, %v1607
  %v1609 = vlaneseq
  %v1610 = vshrl.u32 %v1609, 7
  %v1611 = vsub.s32 4, %v1610
  %v1612 = vrot.slane %v1445, %v1611
  %v1613 = vlaneseq
  %v1614 = vshrl.u32 %v1613, 7
  %v1615 = vsub.s32 4, %v1614
  %v1616 = vrot.slane %v1446, %v1615
  %v1617 = vlaneseq
  %v1618 = vshrl.u32 %v1617, 7
  %v1619 = vsub.s32 4, %v1618
  %v1620 = vrot.slane %v1447, %v1619
  %v1621 = vlaneseq
  %v1622 = vshrl.u32 %v1621, 7
  %v1623 = vsub.s32 4, %v1622
  %v1624 = vrot.slane %v1448, %v1623
  %v1625 = vlaneseq
  %v1626 = vshrl.u32 %v1625, 7
  %v1627 = vsub.s32 4, %v1626
  %v1628 = vrot.slane %v1449, %v1627
  %v1629 = vlaneseq
  %v1630 = vshrl.u32 %v1629, 7
  %v1631 = vsub.s32 4, %v1630
  %v1632 = vrot.slane %v1450, %v1631
  %v1633 = vlaneseq
  %v1634 = vshrl.u32 %v1633, 7
  %v1635 = vsub.s32 4, %v1634
  %v1636 = vrot.slane %v1451, %v1635
  %v1637 = vmul.f32 %v1568, %v1608
  %v1638 = vmul.f32 %v1573, %v1612
  %v1639 = vmul.f32 %v1578, %v1616
  %v1640 = vmul.f32 %v1583, %v1620
  %v1641 = vmul.f32 %v1588, %v1624
  %v1642 = vmul.f32 %v1593, %v1628
  %v1643 = vmul.f32 %v1598, %v1632
  %v1644 = vmul.f32 %v1603, %v1636
  %v1645 = vsub.f32 %v1444, %v1637
  %v1646 = vsub.f32 %v1445, %v1638
  %v1647 = vsub.f32 %v1446, %v1639
  %v1648 = vsub.f32 %v1447, %v1640
  %v1649 = vsub.f32 %v1448, %v1641
  %v1650 = vsub.f32 %v1449, %v1642
  %v1651 = vsub.f32 %v1450, %v1643
  %v1652 = vsub.f32 %v1451, %v1644
  %v1653 = vsel %vm1516, 1, 0
  %vm1654 = vcmp.eq.s32.totalorder %v1653, 1
  %v1655 = vsel %vm1654, %v1645, %v1444
  %v1656 = vsel %vm1654, %v1646, %v1445
  %v1657 = vsel %vm1654, %v1647, %v1446
  %v1658 = vsel %vm1654, %v1648, %v1447
  %v1659 = vsel %vm1654, %v1649, %v1448
  %v1660 = vsel %vm1654, %v1650, %v1449
  %v1661 = vsel %vm1654, %v1651, %v1450
  %v1662 = vsel %vm1654, %v1652, %v1451
  %v1671 = vrot.slane %v1444, 4
  %v1672 = vrot.slane %v1445, 4
  %v1673 = vrot.slane %v1446, 4
  %v1674 = vrot.slane %v1447, 4
  %v1675 = vrot.slane %v1448, 4
  %v1676 = vrot.slane %v1449, 4
  %v1677 = vrot.slane %v1450, 4
  %v1678 = vrot.slane %v1451, 4
  %1679 = vrot.lane.b32.xlu0 %v1671, 124
  %v1680 = vpop.permute.xlu0 %1679
  %1681 = vrot.lane.b32.xlu0 %v1672, 124
  %v1682 = vpop.permute.xlu0 %1681
  %1683 = vrot.lane.b32.xlu0 %v1673, 124
  %v1684 = vpop.permute.xlu0 %1683
  %1685 = vrot.lane.b32.xlu0 %v1674, 124
  %v1686 = vpop.permute.xlu0 %1685
  %1687 = vrot.lane.b32.xlu0 %v1675, 124
  %v1688 = vpop.permute.xlu0 %1687
  %1689 = vrot.lane.b32.xlu0 %v1676, 124
  %v1690 = vpop.permute.xlu0 %1689
  %1691 = vrot.lane.b32.xlu0 %v1677, 124
  %v1692 = vpop.permute.xlu0 %1691
  %1693 = vrot.lane.b32.xlu0 %v1678, 124
  %v1694 = vpop.permute.xlu0 %1693
  %v1703 = vmul.f32 %v1492, %v1680
  %v1704 = vmul.f32 %v1493, %v1682
  %v1705 = vmul.f32 %v1494, %v1684
  %v1706 = vmul.f32 %v1495, %v1686
  %v1707 = vmul.f32 %v1496, %v1688
  %v1708 = vmul.f32 %v1497, %v1690
  %v1709 = vmul.f32 %v1498, %v1692
  %v1710 = vmul.f32 %v1499, %v1694
  %vm1711 = vcmp.gt.f32.partialorder %v1655, 1e-30
  %vm1712 = vcmp.gt.f32.partialorder %v1656, 1e-30
  %vm1713 = vcmp.gt.f32.partialorder %v1657, 1e-30
  %vm1714 = vcmp.gt.f32.partialorder %v1658, 1e-30
  %vm1715 = vcmp.gt.f32.partialorder %v1659, 1e-30
  %vm1716 = vcmp.gt.f32.partialorder %v1660, 1e-30
  %vm1717 = vcmp.gt.f32.partialorder %v1661, 1e-30
  %vm1718 = vcmp.gt.f32.partialorder %v1662, 1e-30
  %v1719 = vsel %vm1711, %v1655, 1e-30
  %v1720 = vsel %vm1712, %v1656, 1e-30
  %v1721 = vsel %vm1713, %v1657, 1e-30
  %v1722 = vsel %vm1714, %v1658, 1e-30
  %v1723 = vsel %vm1715, %v1659, 1e-30
  %v1724 = vsel %vm1716, %v1660, 1e-30
  %v1725 = vsel %vm1717, %v1661, 1e-30
  %v1726 = vsel %vm1718, %v1662, 1e-30
  %vm1727 = vcmp.gt.s32.totalorder %v643, 5
  %v1728 = vlaneseq
  %v1729 = vshrl.u32 %v1728, 7
  %v1730 = vsub.s32 5, %v1729
  %v1731 = vrot.slane %v1719, %v1730
  %v1732 = vlaneseq
  %v1733 = vshrl.u32 %v1732, 7
  %v1734 = vsub.s32 5, %v1733
  %v1735 = vrot.slane %v1720, %v1734
  %v1736 = vlaneseq
  %v1737 = vshrl.u32 %v1736, 7
  %v1738 = vsub.s32 5, %v1737
  %v1739 = vrot.slane %v1721, %v1738
  %v1740 = vlaneseq
  %v1741 = vshrl.u32 %v1740, 7
  %v1742 = vsub.s32 5, %v1741
  %v1743 = vrot.slane %v1722, %v1742
  %v1744 = vlaneseq
  %v1745 = vshrl.u32 %v1744, 7
  %v1746 = vsub.s32 5, %v1745
  %v1747 = vrot.slane %v1723, %v1746
  %v1748 = vlaneseq
  %v1749 = vshrl.u32 %v1748, 7
  %v1750 = vsub.s32 5, %v1749
  %v1751 = vrot.slane %v1724, %v1750
  %v1752 = vlaneseq
  %v1753 = vshrl.u32 %v1752, 7
  %v1754 = vsub.s32 5, %v1753
  %v1755 = vrot.slane %v1725, %v1754
  %v1756 = vlaneseq
  %v1757 = vshrl.u32 %v1756, 7
  %v1758 = vsub.s32 5, %v1757
  %v1759 = vrot.slane %v1726, %v1758
  %v1760 = vrcp.pop %v1731
  %v1761 = vmul.f32 %v1655, %v1760
  %v1762 = vrcp.pop %v1735
  %v1763 = vmul.f32 %v1656, %v1762
  %v1764 = vrcp.pop %v1739
  %v1765 = vmul.f32 %v1657, %v1764
  %v1766 = vrcp.pop %v1743
  %v1767 = vmul.f32 %v1658, %v1766
  %v1768 = vrcp.pop %v1747
  %v1769 = vmul.f32 %v1659, %v1768
  %v1770 = vrcp.pop %v1751
  %v1771 = vmul.f32 %v1660, %v1770
  %v1772 = vrcp.pop %v1755
  %v1773 = vmul.f32 %v1661, %v1772
  %v1774 = vrcp.pop %v1759
  %v1775 = vmul.f32 %v1662, %v1774
  %1777 = vset.pattern.permute.xlu0 5
  %1778 = vperm.xlu0 %1777, %v1761
  %v1779 = vpop.permute.xlu0 %1778
  %1782 = vset.pattern.permute.xlu0 5
  %1783 = vperm.xlu0 %1782, %v1763
  %v1784 = vpop.permute.xlu0 %1783
  %1787 = vset.pattern.permute.xlu0 5
  %1788 = vperm.xlu0 %1787, %v1765
  %v1789 = vpop.permute.xlu0 %1788
  %1792 = vset.pattern.permute.xlu0 5
  %1793 = vperm.xlu0 %1792, %v1767
  %v1794 = vpop.permute.xlu0 %1793
  %1797 = vset.pattern.permute.xlu0 5
  %1798 = vperm.xlu0 %1797, %v1769
  %v1799 = vpop.permute.xlu0 %1798
  %1802 = vset.pattern.permute.xlu0 5
  %1803 = vperm.xlu0 %1802, %v1771
  %v1804 = vpop.permute.xlu0 %1803
  %1807 = vset.pattern.permute.xlu0 5
  %1808 = vperm.xlu0 %1807, %v1773
  %v1809 = vpop.permute.xlu0 %1808
  %1812 = vset.pattern.permute.xlu0 5
  %1813 = vperm.xlu0 %1812, %v1775
  %v1814 = vpop.permute.xlu0 %1813
  %v1816 = vlaneseq
  %v1817 = vshrl.u32 %v1816, 7
  %v1818 = vsub.s32 5, %v1817
  %v1819 = vrot.slane %v1655, %v1818
  %v1820 = vlaneseq
  %v1821 = vshrl.u32 %v1820, 7
  %v1822 = vsub.s32 5, %v1821
  %v1823 = vrot.slane %v1656, %v1822
  %v1824 = vlaneseq
  %v1825 = vshrl.u32 %v1824, 7
  %v1826 = vsub.s32 5, %v1825
  %v1827 = vrot.slane %v1657, %v1826
  %v1828 = vlaneseq
  %v1829 = vshrl.u32 %v1828, 7
  %v1830 = vsub.s32 5, %v1829
  %v1831 = vrot.slane %v1658, %v1830
  %v1832 = vlaneseq
  %v1833 = vshrl.u32 %v1832, 7
  %v1834 = vsub.s32 5, %v1833
  %v1835 = vrot.slane %v1659, %v1834
  %v1836 = vlaneseq
  %v1837 = vshrl.u32 %v1836, 7
  %v1838 = vsub.s32 5, %v1837
  %v1839 = vrot.slane %v1660, %v1838
  %v1840 = vlaneseq
  %v1841 = vshrl.u32 %v1840, 7
  %v1842 = vsub.s32 5, %v1841
  %v1843 = vrot.slane %v1661, %v1842
  %v1844 = vlaneseq
  %v1845 = vshrl.u32 %v1844, 7
  %v1846 = vsub.s32 5, %v1845
  %v1847 = vrot.slane %v1662, %v1846
  %v1848 = vmul.f32 %v1779, %v1819
  %v1849 = vmul.f32 %v1784, %v1823
  %v1850 = vmul.f32 %v1789, %v1827
  %v1851 = vmul.f32 %v1794, %v1831
  %v1852 = vmul.f32 %v1799, %v1835
  %v1853 = vmul.f32 %v1804, %v1839
  %v1854 = vmul.f32 %v1809, %v1843
  %v1855 = vmul.f32 %v1814, %v1847
  %v1856 = vsub.f32 %v1655, %v1848
  %v1857 = vsub.f32 %v1656, %v1849
  %v1858 = vsub.f32 %v1657, %v1850
  %v1859 = vsub.f32 %v1658, %v1851
  %v1860 = vsub.f32 %v1659, %v1852
  %v1861 = vsub.f32 %v1660, %v1853
  %v1862 = vsub.f32 %v1661, %v1854
  %v1863 = vsub.f32 %v1662, %v1855
  %v1864 = vsel %vm1727, 1, 0
  %vm1865 = vcmp.eq.s32.totalorder %v1864, 1
  %v1866 = vsel %vm1865, %v1856, %v1655
  %v1867 = vsel %vm1865, %v1857, %v1656
  %v1868 = vsel %vm1865, %v1858, %v1657
  %v1869 = vsel %vm1865, %v1859, %v1658
  %v1870 = vsel %vm1865, %v1860, %v1659
  %v1871 = vsel %vm1865, %v1861, %v1660
  %v1872 = vsel %vm1865, %v1862, %v1661
  %v1873 = vsel %vm1865, %v1863, %v1662
  %v1882 = vrot.slane %v1655, 5
  %v1883 = vrot.slane %v1656, 5
  %v1884 = vrot.slane %v1657, 5
  %v1885 = vrot.slane %v1658, 5
  %v1886 = vrot.slane %v1659, 5
  %v1887 = vrot.slane %v1660, 5
  %v1888 = vrot.slane %v1661, 5
  %v1889 = vrot.slane %v1662, 5
  %1890 = vrot.lane.b32.xlu0 %v1882, 123
  %v1891 = vpop.permute.xlu0 %1890
  %1892 = vrot.lane.b32.xlu0 %v1883, 123
  %v1893 = vpop.permute.xlu0 %1892
  %1894 = vrot.lane.b32.xlu0 %v1884, 123
  %v1895 = vpop.permute.xlu0 %1894
  %1896 = vrot.lane.b32.xlu0 %v1885, 123
  %v1897 = vpop.permute.xlu0 %1896
  %1898 = vrot.lane.b32.xlu0 %v1886, 123
  %v1899 = vpop.permute.xlu0 %1898
  %1900 = vrot.lane.b32.xlu0 %v1887, 123
  %v1901 = vpop.permute.xlu0 %1900
  %1902 = vrot.lane.b32.xlu0 %v1888, 123
  %v1903 = vpop.permute.xlu0 %1902
  %1904 = vrot.lane.b32.xlu0 %v1889, 123
  %v1905 = vpop.permute.xlu0 %1904
  %v1914 = vmul.f32 %v1703, %v1891
  %v1915 = vmul.f32 %v1704, %v1893
  %v1916 = vmul.f32 %v1705, %v1895
  %v1917 = vmul.f32 %v1706, %v1897
  %v1918 = vmul.f32 %v1707, %v1899
  %v1919 = vmul.f32 %v1708, %v1901
  %v1920 = vmul.f32 %v1709, %v1903
  %v1921 = vmul.f32 %v1710, %v1905
  %vm1922 = vcmp.gt.f32.partialorder %v1866, 1e-30
  %vm1923 = vcmp.gt.f32.partialorder %v1867, 1e-30
  %vm1924 = vcmp.gt.f32.partialorder %v1868, 1e-30
  %vm1925 = vcmp.gt.f32.partialorder %v1869, 1e-30
  %vm1926 = vcmp.gt.f32.partialorder %v1870, 1e-30
  %vm1927 = vcmp.gt.f32.partialorder %v1871, 1e-30
  %vm1928 = vcmp.gt.f32.partialorder %v1872, 1e-30
  %vm1929 = vcmp.gt.f32.partialorder %v1873, 1e-30
  %v1930 = vsel %vm1922, %v1866, 1e-30
  %v1931 = vsel %vm1923, %v1867, 1e-30
  %v1932 = vsel %vm1924, %v1868, 1e-30
  %v1933 = vsel %vm1925, %v1869, 1e-30
  %v1934 = vsel %vm1926, %v1870, 1e-30
  %v1935 = vsel %vm1927, %v1871, 1e-30
  %v1936 = vsel %vm1928, %v1872, 1e-30
  %v1937 = vsel %vm1929, %v1873, 1e-30
  %vm1938 = vcmp.gt.s32.totalorder %v643, 6
  %v1939 = vlaneseq
  %v1940 = vshrl.u32 %v1939, 7
  %v1941 = vsub.s32 6, %v1940
  %v1942 = vrot.slane %v1930, %v1941
  %v1943 = vlaneseq
  %v1944 = vshrl.u32 %v1943, 7
  %v1945 = vsub.s32 6, %v1944
  %v1946 = vrot.slane %v1931, %v1945
  %v1947 = vlaneseq
  %v1948 = vshrl.u32 %v1947, 7
  %v1949 = vsub.s32 6, %v1948
  %v1950 = vrot.slane %v1932, %v1949
  %v1951 = vlaneseq
  %v1952 = vshrl.u32 %v1951, 7
  %v1953 = vsub.s32 6, %v1952
  %v1954 = vrot.slane %v1933, %v1953
  %v1955 = vlaneseq
  %v1956 = vshrl.u32 %v1955, 7
  %v1957 = vsub.s32 6, %v1956
  %v1958 = vrot.slane %v1934, %v1957
  %v1959 = vlaneseq
  %v1960 = vshrl.u32 %v1959, 7
  %v1961 = vsub.s32 6, %v1960
  %v1962 = vrot.slane %v1935, %v1961
  %v1963 = vlaneseq
  %v1964 = vshrl.u32 %v1963, 7
  %v1965 = vsub.s32 6, %v1964
  %v1966 = vrot.slane %v1936, %v1965
  %v1967 = vlaneseq
  %v1968 = vshrl.u32 %v1967, 7
  %v1969 = vsub.s32 6, %v1968
  %v1970 = vrot.slane %v1937, %v1969
  %v1971 = vrcp.pop %v1942
  %v1972 = vmul.f32 %v1866, %v1971
  %v1973 = vrcp.pop %v1946
  %v1974 = vmul.f32 %v1867, %v1973
  %v1975 = vrcp.pop %v1950
  %v1976 = vmul.f32 %v1868, %v1975
  %v1977 = vrcp.pop %v1954
  %v1978 = vmul.f32 %v1869, %v1977
  %v1979 = vrcp.pop %v1958
  %v1980 = vmul.f32 %v1870, %v1979
  %v1981 = vrcp.pop %v1962
  %v1982 = vmul.f32 %v1871, %v1981
  %v1983 = vrcp.pop %v1966
  %v1984 = vmul.f32 %v1872, %v1983
  %v1985 = vrcp.pop %v1970
  %v1986 = vmul.f32 %v1873, %v1985
  %1988 = vset.pattern.permute.xlu0 6
  %1989 = vperm.xlu0 %1988, %v1972
  %v1990 = vpop.permute.xlu0 %1989
  %1993 = vset.pattern.permute.xlu0 6
  %1994 = vperm.xlu0 %1993, %v1974
  %v1995 = vpop.permute.xlu0 %1994
  %1998 = vset.pattern.permute.xlu0 6
  %1999 = vperm.xlu0 %1998, %v1976
  %v2000 = vpop.permute.xlu0 %1999
  %2003 = vset.pattern.permute.xlu0 6
  %2004 = vperm.xlu0 %2003, %v1978
  %v2005 = vpop.permute.xlu0 %2004
  %2008 = vset.pattern.permute.xlu0 6
  %2009 = vperm.xlu0 %2008, %v1980
  %v2010 = vpop.permute.xlu0 %2009
  %2013 = vset.pattern.permute.xlu0 6
  %2014 = vperm.xlu0 %2013, %v1982
  %v2015 = vpop.permute.xlu0 %2014
  %2018 = vset.pattern.permute.xlu0 6
  %2019 = vperm.xlu0 %2018, %v1984
  %v2020 = vpop.permute.xlu0 %2019
  %2023 = vset.pattern.permute.xlu0 6
  %2024 = vperm.xlu0 %2023, %v1986
  %v2025 = vpop.permute.xlu0 %2024
  %v2027 = vlaneseq
  %v2028 = vshrl.u32 %v2027, 7
  %v2029 = vsub.s32 6, %v2028
  %v2030 = vrot.slane %v1866, %v2029
  %v2031 = vlaneseq
  %v2032 = vshrl.u32 %v2031, 7
  %v2033 = vsub.s32 6, %v2032
  %v2034 = vrot.slane %v1867, %v2033
  %v2035 = vlaneseq
  %v2036 = vshrl.u32 %v2035, 7
  %v2037 = vsub.s32 6, %v2036
  %v2038 = vrot.slane %v1868, %v2037
  %v2039 = vlaneseq
  %v2040 = vshrl.u32 %v2039, 7
  %v2041 = vsub.s32 6, %v2040
  %v2042 = vrot.slane %v1869, %v2041
  %v2043 = vlaneseq
  %v2044 = vshrl.u32 %v2043, 7
  %v2045 = vsub.s32 6, %v2044
  %v2046 = vrot.slane %v1870, %v2045
  %v2047 = vlaneseq
  %v2048 = vshrl.u32 %v2047, 7
  %v2049 = vsub.s32 6, %v2048
  %v2050 = vrot.slane %v1871, %v2049
  %v2051 = vlaneseq
  %v2052 = vshrl.u32 %v2051, 7
  %v2053 = vsub.s32 6, %v2052
  %v2054 = vrot.slane %v1872, %v2053
  %v2055 = vlaneseq
  %v2056 = vshrl.u32 %v2055, 7
  %v2057 = vsub.s32 6, %v2056
  %v2058 = vrot.slane %v1873, %v2057
  %v2059 = vmul.f32 %v1990, %v2030
  %v2060 = vmul.f32 %v1995, %v2034
  %v2061 = vmul.f32 %v2000, %v2038
  %v2062 = vmul.f32 %v2005, %v2042
  %v2063 = vmul.f32 %v2010, %v2046
  %v2064 = vmul.f32 %v2015, %v2050
  %v2065 = vmul.f32 %v2020, %v2054
  %v2066 = vmul.f32 %v2025, %v2058
  %v2067 = vsub.f32 %v1866, %v2059
  %v2068 = vsub.f32 %v1867, %v2060
  %v2069 = vsub.f32 %v1868, %v2061
  %v2070 = vsub.f32 %v1869, %v2062
  %v2071 = vsub.f32 %v1870, %v2063
  %v2072 = vsub.f32 %v1871, %v2064
  %v2073 = vsub.f32 %v1872, %v2065
  %v2074 = vsub.f32 %v1873, %v2066
  %v2075 = vsel %vm1938, 1, 0
  %vm2076 = vcmp.eq.s32.totalorder %v2075, 1
  %v2077 = vsel %vm2076, %v2067, %v1866
  %v2078 = vsel %vm2076, %v2068, %v1867
  %v2079 = vsel %vm2076, %v2069, %v1868
  %v2080 = vsel %vm2076, %v2070, %v1869
  %v2081 = vsel %vm2076, %v2071, %v1870
  %v2082 = vsel %vm2076, %v2072, %v1871
  %v2083 = vsel %vm2076, %v2073, %v1872
  %v2084 = vsel %vm2076, %v2074, %v1873
  %v2093 = vrot.slane %v1866, 6
  %v2094 = vrot.slane %v1867, 6
  %v2095 = vrot.slane %v1868, 6
  %v2096 = vrot.slane %v1869, 6
  %v2097 = vrot.slane %v1870, 6
  %v2098 = vrot.slane %v1871, 6
  %v2099 = vrot.slane %v1872, 6
  %v2100 = vrot.slane %v1873, 6
  %2101 = vrot.lane.b32.xlu0 %v2093, 122
  %v2102 = vpop.permute.xlu0 %2101
  %2103 = vrot.lane.b32.xlu0 %v2094, 122
  %v2104 = vpop.permute.xlu0 %2103
  %2105 = vrot.lane.b32.xlu0 %v2095, 122
  %v2106 = vpop.permute.xlu0 %2105
  %2107 = vrot.lane.b32.xlu0 %v2096, 122
  %v2108 = vpop.permute.xlu0 %2107
  %2109 = vrot.lane.b32.xlu0 %v2097, 122
  %v2110 = vpop.permute.xlu0 %2109
  %2111 = vrot.lane.b32.xlu0 %v2098, 122
  %v2112 = vpop.permute.xlu0 %2111
  %2113 = vrot.lane.b32.xlu0 %v2099, 122
  %v2114 = vpop.permute.xlu0 %2113
  %2115 = vrot.lane.b32.xlu0 %v2100, 122
  %v2116 = vpop.permute.xlu0 %2115
  %v2125 = vmul.f32 %v1914, %v2102
  %v2126 = vmul.f32 %v1915, %v2104
  %v2127 = vmul.f32 %v1916, %v2106
  %v2128 = vmul.f32 %v1917, %v2108
  %v2129 = vmul.f32 %v1918, %v2110
  %v2130 = vmul.f32 %v1919, %v2112
  %v2131 = vmul.f32 %v1920, %v2114
  %v2132 = vmul.f32 %v1921, %v2116
  %v2141 = vrot.slane %v2077, 7
  %v2142 = vrot.slane %v2078, 7
  %v2143 = vrot.slane %v2079, 7
  %v2144 = vrot.slane %v2080, 7
  %v2145 = vrot.slane %v2081, 7
  %v2146 = vrot.slane %v2082, 7
  %v2147 = vrot.slane %v2083, 7
  %v2148 = vrot.slane %v2084, 7
  %2149 = vrot.lane.b32.xlu0 %v2141, 121
  %v2150 = vpop.permute.xlu0 %2149
  %2151 = vrot.lane.b32.xlu0 %v2142, 121
  %v2152 = vpop.permute.xlu0 %2151
  %2153 = vrot.lane.b32.xlu0 %v2143, 121
  %v2154 = vpop.permute.xlu0 %2153
  %2155 = vrot.lane.b32.xlu0 %v2144, 121
  %v2156 = vpop.permute.xlu0 %2155
  %2157 = vrot.lane.b32.xlu0 %v2145, 121
  %v2158 = vpop.permute.xlu0 %2157
  %2159 = vrot.lane.b32.xlu0 %v2146, 121
  %v2160 = vpop.permute.xlu0 %2159
  %2161 = vrot.lane.b32.xlu0 %v2147, 121
  %v2162 = vpop.permute.xlu0 %2161
  %2163 = vrot.lane.b32.xlu0 %v2148, 121
  %v2164 = vpop.permute.xlu0 %2163
  %v2173 = vmul.f32 %v2125, %v2150
  %v2174 = vmul.f32 %v2126, %v2152
  %v2175 = vmul.f32 %v2127, %v2154
  %v2176 = vmul.f32 %v2128, %v2156
  %v2177 = vmul.f32 %v2129, %v2158
  %v2178 = vmul.f32 %v2130, %v2160
  %v2179 = vmul.f32 %v2131, %v2162
  %v2180 = vmul.f32 %v2132, %v2164
  %v2189 = vrot.slane %v2174, 7
  %vm2190 = vcmask 1041409
  %v2191 = vsel %vm2190, %v2189, %v2173
  %v2192 = vrot.slane %v2175, 6
  %vm2193 = vcmask 1042434
  %v2194 = vsel %vm2193, %v2192, %v2191
  %v2195 = vrot.slane %v2176, 5
  %vm2196 = vcmask 1043459
  %v2197 = vsel %vm2196, %v2195, %v2194
  %v2198 = vrot.slane %v2177, 4
  %vm2199 = vcmask 1044484
  %v2200 = vsel %vm2199, %v2198, %v2197
  %v2201 = vrot.slane %v2178, 3
  %vm2202 = vcmask 1045509
  %v2203 = vsel %vm2202, %v2201, %v2200
  %v2204 = vrot.slane %v2179, 2
  %vm2205 = vcmask 1046534
  %v2206 = vsel %vm2205, %v2204, %v2203
  %v2207 = vrot.slane %v2180, 1
  %vm2208 = vcmask 1047559
  %v2209 = vsel %vm2208, %v2207, %v2206
  %vm2211 = vcmask 7168
  %2212 = vst.msk [vmem:[%s3] sm:$0xff] %vm2211, %v2209
  // Predicated region
  $region14: #{_lambda_.2} parent=0 // pred_check
    _
  $region15: #{_lambda_.2} parent=0 // pred_check_branch
    %2214 = sbr.rel (0) target = $region17
  $region16: #{_lambda_.2} parent=0 // pred_region
    _
  $region17: #{_lambda_.2} parent=0 // pred_fallthru
    _
  // Predicated region
  $region18: #{_lambda_.2} parent=0 // pred_check
    _
  $region19: #{_lambda_.2} parent=0 // pred_check_branch
    %2216 = sbr.rel (0) target = $region21
  $region20: #{_lambda_.2} parent=0 // pred_region
    _
  $region21: #{_lambda_.2} parent=0 // pred_fallthru
    _

</llo_original>
